<compile_context>
chip_gen: v7x
topology: tpu7x:2x2x1
jax: 0.10.0
libtpu: 0.0.40
codegen_flags: <defaults>
</compile_context>

<pallas_src>
import functools

import jax
import jax.numpy as jnp
import numpy as np
from jax.experimental import pallas as pl
from jax.experimental.pallas import tpu as pltpu

EPS = 1e-5


# --------------------------- fused Pallas kernel -----------------------------

def _aspp_fused_kernel(xf_ref, tapmask_ref, wconv_ref, bconv_ref, wpool_ref,
                       bpool_ref, wprojc_ref, wprojp_ref, bproj_ref, o_ref,
                       *scratch, H, W, pad, offsets, mask_row, tile_rows,
                       cin, cpad, use_im2col):
    """Fused ASPP forward for one (image, spatial row-tile) grid point.

    xf_ref:      (1, Cin, L) f32   height-padded, flattened, flat-halo'd input
    tapmask_ref: (Mu, tile_hw) f32 deduped width-validity masks (one row per ox)
    wconv_ref:   bf16 conv weights; (Cb*Cout, T*cpad) im2col layout, or
                 (T, Cb*Cout, Cin) per-tap layout (BN scale folded in both)
    bconv_ref:   (Cb*Cout, 1) f32  per-branch BN shifts
    wpool_ref:   (Cout, Cin) f32   pool-branch 1x1 weight; bpool_ref (Cout, 1)
    wprojc_ref:  (Cout, Cb*Cout) bf16  projection rows for the conv branches
    wprojp_ref:  (Cout, Cout) f32      projection rows for the pool branch
    bproj_ref:   (Cout, 1) f32
    o_ref:       (1, Cout, tile_hw)    lane-dense output tile, NCHW order
    scratch:     [(T*cpad, tile_hw) bf16 im2col patches]  (im2col path only)
    """
    HW = H * W
    tile_hw = tile_rows * W
    halo = 2 * pad * W + 2 * pad
    slab_len = tile_hw + halo

    st = pl.program_id(1)
    row_off = pl.multiple_of(st * tile_hw, tile_hw)   # lane-aligned tile offset

    # One dynamic (aligned) load of this tile's slab (rows + max-dilation halo);
    # every tap window is then a cheap static sub-slice of it.
    slab = xf_ref[0, :, pl.ds(row_off, slab_len)]     # (Cin, slab_len) f32

    # Pool-branch global mean over the full (unpadded) image, reduced immediately
    # so nothing (Cin, HW)-sized stays live across the conv matmuls.
    # TODO(synk): at production shapes compute this once per image, not per tile.
    c0 = pad + pad * W
    mean = jnp.mean(xf_ref[0, :, c0:c0 + HW], axis=1, keepdims=True)  # (Cin,1) f32

    def window(t, oy, ox):
        base = pad + (pad + oy) * W + ox
        win = slab[:, base:base + tile_hw]            # (Cin, tile_hw) f32
        r = mask_row[t]
        if r >= 0:                                    # kill width-halo wraparound
            win = jnp.where(tapmask_ref[r:r + 1, :] > 0.0, win, 0.0)
        return win

    nrows = bconv_ref.shape[0]                        # Cb * Cout

    if use_im2col:
        # Tiny-Cin path: gather all taps into a sublane-padded bf16 scratch and
        # do ONE big matmul (K = T*cpad fills the MXU even when Cin is tiny).
        patches_ref = scratch[0]
        zpad = (jnp.zeros((cpad - cin, tile_hw), jnp.float32)
                if cpad != cin else None)
        for t, (oy, ox) in enumerate(offsets):
            win = window(t, oy, ox)
            if zpad is not None:
                win = jnp.concatenate([win, zpad], axis=0)          # (cpad, tile_hw)
            patches_ref[t * cpad:(t + 1) * cpad, :] = win.astype(patches_ref.dtype)
        conv = jnp.dot(wconv_ref[...], patches_ref[...],
                       preferred_element_type=jnp.float32)          # (Cb*Cout, tile_hw)
    else:
        # Production-Cin path: no materialized im2col — accumulate T shifted
        # matmuls (K = Cin per tap) in an f32 accumulator.
        conv = jnp.zeros((nrows, tile_hw), jnp.float32)
        for t, (oy, ox) in enumerate(offsets):
            win = window(t, oy, ox).astype(jnp.bfloat16)
            conv = conv + jnp.dot(wconv_ref[t], win,
                                  preferred_element_type=jnp.float32)

    conv = jnp.maximum(conv + bconv_ref[...], 0.0)                  # f32, BN shift + ReLU

    # Global-average-pool branch. Bilinear upsampling of a 1x1 map to HxW
    # (align_corners=False) is an exact broadcast, kept as a (Cout, 1) vector.
    pooled = jnp.dot(wpool_ref[...], mean, preferred_element_type=jnp.float32)
    pooled = jnp.maximum(pooled + bpool_ref[...], 0.0)              # (Cout, 1)

    # 1x1 projection over the (virtually concatenated) 5*Cout channels; the pool
    # branch contributes a per-row constant.
    proj = jnp.dot(wprojc_ref[...], conv.astype(jnp.bfloat16),
                   preferred_element_type=jnp.float32)
    proj = proj + jnp.dot(wprojp_ref[...], pooled,
                          preferred_element_type=jnp.float32)
    out = jnp.maximum(proj + bproj_ref[...], 0.0)                   # (Cout, tile_hw)
    o_ref[0] = out.astype(o_ref.dtype)


def aspp_fused_pallas(xf, tapmask, wconv, bconv, wpool, bpool, wprojc, wprojp,
                      bproj, *, H, W, pad, offsets, mask_row, cin, cpad,
                      n_spatial_tiles, use_im2col):
    N, Cin, L = xf.shape
    HW = H * W
    Cout = wprojc.shape[0]
    T = len(offsets)
    assert H % n_spatial_tiles == 0
    tile_rows = H // n_spatial_tiles
    tile_hw = tile_rows * W

    kern = functools.partial(
        _aspp_fused_kernel, H=H, W=W, pad=pad, offsets=tuple(offsets),
        mask_row=tuple(mask_row), tile_rows=tile_rows, cin=cin, cpad=cpad,
        use_im2col=use_im2col)

    def const_spec(a):
        nd = a.ndim
        return pl.BlockSpec(a.shape, lambda n, s, _nd=nd: (0,) * _nd)

    scratch = ([pltpu.VMEM((T * cpad, tile_hw), jnp.bfloat16)]
               if use_im2col else [])

    return pl.pallas_call(
        kern,
        out_shape=jax.ShapeDtypeStruct((N, Cout, HW), xf.dtype),
        grid=(N, n_spatial_tiles),
        in_specs=[
            pl.BlockSpec((1, Cin, L), lambda n, s: (n, 0, 0)),
            pl.BlockSpec((tapmask.shape[0], tile_hw), lambda n, s: (0, s)),
            const_spec(wconv), const_spec(bconv), const_spec(wpool),
            const_spec(bpool), const_spec(wprojc), const_spec(wprojp),
            const_spec(bproj),
        ],
        out_specs=pl.BlockSpec((1, Cout, tile_hw), lambda n, s: (n, 0, s)),
        scratch_shapes=scratch,
        compiler_params=pltpu.CompilerParams(
            dimension_semantics=("parallel", "parallel"),
            vmem_limit_bytes=64 * 1024 * 1024),
    )(xf, tapmask, wconv, bconv, wpool, bpool, wprojc, wprojp, bproj)


# --------------------------- weight fusion (setup, host-side) ----------------

def fuse_aspp_params(w1, s1, b1, atrous, wp, sp, bp, wproj, sj, bj,
                     *, Cin, Cout, H, W):
    """Fold BN scales into weights and build both conv-weight layouts."""
    rates = [r for (r, _, _, _) in atrous]
    pad = max(rates)

    # unique tap offsets (center first == the shared 1x1 / 3x3-center tap)
    offsets = [(0, 0)]
    for r in rates:
        for ky in range(3):
            for kx in range(3):
                o = ((ky - 1) * r, (kx - 1) * r)
                if o not in offsets:
                    offsets.append(o)
    idx = {o: i for i, o in enumerate(offsets)}
    T = len(offsets)
    Cb = 1 + len(rates)                                 # number of conv branches
    HW = H * W
    cpad = ((Cin + 15) // 16) * 16                      # bf16 sublane-pack alignment

    # per-tap layout (T, Cb*Cout, Cin) — used by the accumulation path
    wtap = np.zeros((T, Cb * Cout, Cin), np.float32)
    bconv = np.zeros((Cb * Cout, 1), np.float32)

    w1s = np.asarray(w1)[0, 0] * np.asarray(s1).reshape(1, Cout)      # (Cin, Cout)
    wtap[idx[(0, 0)], 0:Cout, :] += w1s.T
    bconv[0:Cout, 0] = np.asarray(b1).reshape(Cout)

    for bi, (r, w, s, b) in enumerate(atrous, start=1):
        ws = np.asarray(w) * np.asarray(s).reshape(1, 1, 1, Cout)      # (3,3,Cin,Cout)
        for ky in range(3):
            for kx in range(3):
                t = idx[((ky - 1) * r, (kx - 1) * r)]
                wtap[t, bi * Cout:(bi + 1) * Cout, :] += ws[ky, kx].T
        bconv[bi * Cout:(bi + 1) * Cout, 0] = np.asarray(b).reshape(Cout)

    # im2col layout (Cb*Cout, T*cpad) with zero columns for the sublane padding
    wconv_im2col = np.zeros((Cb * Cout, T * cpad), np.float32)
    for t in range(T):
        wconv_im2col[:, t * cpad:t * cpad + Cin] = wtap[t]

    # pool branch (BN scale folded)
    wpoolT = (np.asarray(wp) * np.asarray(sp).reshape(1, Cout)).T      # (Cout, Cin)
    bpoolv = np.asarray(bp).reshape(Cout, 1)

    # projection (scale folded), split into conv-branch rows / pool-branch rows
    wproj2 = np.asarray(wproj)[0, 0] * np.asarray(sj).reshape(1, Cout)  # (5*Cout, Cout)
    wprojcT = wproj2[:Cb * Cout].T                                       # (Cout, Cb*Cout)
    wprojpT = wproj2[Cb * Cout:].T                                       # (Cout, Cout)
    bprojv = np.asarray(bj).reshape(Cout, 1)

    # deduplicated width-validity masks: one row per distinct nonzero ox,
    # sublane-padded to a multiple of 8 rows (height halo is physical zeros).
    ox_vals = sorted({ox for (_, ox) in offsets if ox != 0})
    mrows = ((max(len(ox_vals), 1) + 7) // 8) * 8
    cols = np.tile(np.arange(W), H)
    tapmask = np.ones((mrows, HW), np.float32)
    for i, ox in enumerate(ox_vals):
        tapmask[i] = ((cols + ox >= 0) & (cols + ox < W)).astype(np.float32)
    mask_row = tuple(ox_vals.index(ox) if ox != 0 else -1 for (_, ox) in offsets)

    f32 = lambda a: jnp.asarray(a, jnp.float32)
    b16 = lambda a: jnp.asarray(a, jnp.bfloat16)
    return dict(pad=pad, offsets=tuple(offsets), mask_row=mask_row, cpad=cpad,
                tapmask=f32(tapmask),
                wconv_im2col=b16(wconv_im2col), wconv_taps=b16(wtap),
                bconv=f32(bconv), wpool=f32(wpoolT), bpool=f32(bpoolv),
                wprojc=b16(wprojcT), wprojp=f32(wprojpT), bproj=f32(bprojv))


def make_aspp_forward(fused, *, n_spatial_tiles=2):
    pad = fused["pad"]

    def fwd(x, *, use_im2col):
        n, cin, h, w = x.shape
        # One shared max-dilation halo: pad height physically, flatten spatial onto
        # the lane axis, add a small flat halo so every tap window is in bounds.
        xh = jnp.pad(x, ((0, 0), (0, 0), (pad, pad), (0, 0)))
        xf = jnp.pad(xh.reshape(n, cin, (h + 2 * pad) * w),
                     ((0, 0), (0, 0), (pad, pad)))
        wconv = fused["wconv_im2col"] if use_im2col else fused["wconv_taps"]
        out = aspp_fused_pallas(
            xf, fused["tapmask"], wconv, fused["bconv"], fused["wpool"],
            fused["bpool"], fused["wprojc"], fused["wprojp"], fused["bproj"],
            H=h, W=w, pad=pad, offsets=fused["offsets"],
            mask_row=fused["mask_row"], cin=cin, cpad=fused["cpad"],
            n_spatial_tiles=n_spatial_tiles, use_im2col=use_im2col)
        # nn.Dropout(0.5): identity in inference mode.
        # TODO(synk): train-mode dropout (random masking) not implemented.
        return out.reshape(n, -1, h, w)       # (N, Cout, H*W) -> NCHW, free reinterpret

    return fwd


# --------------------------- pure-JAX reference ------------------------------

def _ref_conv_bn_relu(x, w, scale, shift, dilation, ksize):
    pad = dilation * (ksize // 2)
    y = jax.lax.conv_general_dilated(
        x, w, window_strides=(1, 1),
        padding=((pad, pad), (pad, pad)),
        rhs_dilation=(dilation, dilation),
        dimension_numbers=('NHWC', 'HWIO', 'NHWC'),
        precision=jax.lax.Precision.HIGHEST)
    return jnp.maximum(y * scale + shift, 0.0)


def _ref_pool_bn_relu(x, w, scale, shift):
    N, H, W, _ = x.shape
    m = jnp.mean(x, axis=(1, 2))                                   # (N, Cin)
    v = jnp.dot(m, w, precision=jax.lax.Precision.HIGHEST)         # (N, Cout)
    y = jnp.maximum(v * scale + shift, 0.0)
    return jnp.broadcast_to(y[:, None, None, :], (N, H, W, y.shape[-1]))


# --------------------------- main ---------------------------------------------

if __name__ == "__main__":
    N, Cin, H, W = 2, 4, 16, 16
    Cout = 32
    rates = (1, 2, 3)

    key = jax.random.PRNGKey(0)
    _keys = iter(jax.random.split(key, 64))

    def nk():
        return next(_keys)

    def make_bn(C):
        gamma = jax.random.uniform(nk(), (C,), minval=0.5, maxval=1.5)
        beta = 0.1 * jax.random.normal(nk(), (C,))
        mean = 0.1 * jax.random.normal(nk(), (C,))
        var = jax.random.uniform(nk(), (C,), minval=0.5, maxval=1.5)
        scale = (gamma / jnp.sqrt(var + EPS)).reshape(1, C).astype(jnp.float32)
        shift = (beta - mean * (gamma / jnp.sqrt(var + EPS))).reshape(1, C).astype(jnp.float32)
        return scale, shift

    # Branch 0: 1x1 conv + BN + ReLU
    w1 = (0.1 * jax.random.normal(nk(), (1, 1, Cin, Cout))).astype(jnp.float32)
    s1, b1 = make_bn(Cout)
    # Atrous branches: 3x3 dilated conv + BN + ReLU
    atrous = []
    for r in rates:
        w = (0.1 * jax.random.normal(nk(), (3, 3, Cin, Cout))).astype(jnp.float32)
        s, b = make_bn(Cout)
        atrous.append((r, w, s, b))
    # Pooling branch: global avg pool + 1x1 conv + BN + ReLU + bilinear upsample
    wp = (0.1 * jax.random.normal(nk(), (Cin, Cout))).astype(jnp.float32)
    sp, bp = make_bn(Cout)
    # Projection: 1x1 conv + BN + ReLU + Dropout(0.5)
    Cproj_in = (2 + len(rates)) * Cout
    wproj = (0.1 * jax.random.normal(nk(), (1, 1, Cproj_in, Cout))).astype(jnp.float32)
    sj, bj = make_bn(Cout)

    x_nchw = jax.random.normal(nk(), (N, Cin, H, W), jnp.float32)

    fused = fuse_aspp_params(w1, s1, b1, atrous, wp, sp, bp, wproj, sj, bj,
                             Cin=Cin, Cout=Cout, H=H, W=W)
    fwd = make_aspp_forward(fused, n_spatial_tiles=2)
    fwd_im2col = jax.jit(functools.partial(fwd, use_im2col=True))    # tiny-Cin path
    fwd_taps = jax.jit(functools.partial(fwd, use_im2col=False))     # production path

    out_a = jax.block_until_ready(fwd_im2col(x_nchw))
    out_b = jax.block_until_ready(fwd_taps(x_nchw))

    def ref_forward(x):
        xh = jnp.transpose(x, (0, 2, 3, 1))
        branches = [_ref_conv_bn_relu(xh, w1, s1, b1, 1, 1)]
        for r, w, s, b in atrous:
            branches.append(_ref_conv_bn_relu(xh, w, s, b, r, 3))
        branches.append(_ref_pool_bn_relu(xh, wp, sp, bp))
        res = jnp.concatenate(branches, axis=-1)
        o = _ref_conv_bn_relu(res, wproj, sj, bj, 1, 1)
        return jnp.transpose(o, (0, 3, 1, 2))

    ref = np.asarray(ref_forward(x_nchw))
    # bf16 MXU operands (f32 accumulate): tolerance relaxed accordingly.
    np.testing.assert_allclose(np.asarray(out_a), ref, rtol=3e-2, atol=3e-2)
    np.testing.assert_allclose(np.asarray(out_b), ref, rtol=3e-2, atol=3e-2)
    assert out_a.shape == (N, Cout, H, W) and out_a.dtype == jnp.float32
    print("KERNEL_OK")
</pallas_src>

<mosaic_0001>
module attributes {stable_mosaic.version = 11 : i64} {
  func.func @_aspp_fused_kernel(%arg0: i32, %arg1: i32, %arg2: memref<1x4x358xf32, #tpu.memory_space<vmem>>, %arg3: memref<8x128xf32, #tpu.memory_space<vmem>>, %arg4: memref<128x400xbf16, #tpu.memory_space<vmem>>, %arg5: memref<128x1xf32, #tpu.memory_space<vmem>>, %arg6: memref<32x4xf32, #tpu.memory_space<vmem>>, %arg7: memref<32x1xf32, #tpu.memory_space<vmem>>, %arg8: memref<32x128xbf16, #tpu.memory_space<vmem>>, %arg9: memref<32x32xf32, #tpu.memory_space<vmem>>, %arg10: memref<32x1xf32, #tpu.memory_space<vmem>>, %arg11: memref<1x32x128xf32, #tpu.memory_space<vmem>>, %arg12: memref<400x128xbf16, #tpu.memory_space<vmem>>) attributes {dimension_semantics = [#tpu.dimension_semantics<parallel>, #tpu.dimension_semantics<parallel>], iteration_bounds = array<i64: 2, 2>, scalar_prefetch = 0 : i64, scratch_operands = 1 : i64, tpu.core_type = #tpu.core_type<tc>, window_params = [{transform_indices = @transform_0, window_bounds = array<i64: 1, 4, 358>}, {transform_indices = @transform_1, window_bounds = array<i64: 8, 128>}, {pipeline_mode = #tpu.pipeline_mode<synchronous>, transform_indices = @transform_2, window_bounds = array<i64: 128, 400>}, {pipeline_mode = #tpu.pipeline_mode<synchronous>, transform_indices = @transform_3, window_bounds = array<i64: 128, 1>}, {pipeline_mode = #tpu.pipeline_mode<synchronous>, transform_indices = @transform_4, window_bounds = array<i64: 32, 4>}, {pipeline_mode = #tpu.pipeline_mode<synchronous>, transform_indices = @transform_5, window_bounds = array<i64: 32, 1>}, {pipeline_mode = #tpu.pipeline_mode<synchronous>, transform_indices = @transform_6, window_bounds = array<i64: 32, 128>}, {pipeline_mode = #tpu.pipeline_mode<synchronous>, transform_indices = @transform_7, window_bounds = array<i64: 32, 32>}, {pipeline_mode = #tpu.pipeline_mode<synchronous>, transform_indices = @transform_8, window_bounds = array<i64: 32, 1>}, {transform_indices = @transform_9, window_bounds = array<i64: 1, 32, 128>}]} {
    %c128_i32 = arith.constant 128 : i32
    %0 = arith.muli %arg1, %c128_i32 : i32
    %1 = tpu.assume_multiple %0, 128 : i32
    %c0 = arith.constant 0 : index
    %c0_0 = arith.constant 0 : index
    %2 = arith.index_cast %1 : i32 to index
    %3 = vector.load %arg2[%c0, %c0_0, %2] : memref<1x4x358xf32, #tpu.memory_space<vmem>>, vector<1x4x230xf32>
    %4 = vector.shape_cast %3 : vector<1x4x230xf32> to vector<4x230xf32>
    %c0_1 = arith.constant 0 : index
    %c0_2 = arith.constant 0 : index
    %c51 = arith.constant 51 : index
    %5 = vector.load %arg2[%c0_1, %c0_2, %c51] : memref<1x4x358xf32, #tpu.memory_space<vmem>>, vector<1x4x256xf32>
    %6 = vector.shape_cast %5 : vector<1x4x256xf32> to vector<4x256xf32>
    %cst = arith.constant dense<0.000000e+00> : vector<4xf32>
    %7 = vector.multi_reduction <add>, %6, %cst [1] : vector<4x256xf32> to vector<4xf32>
    %8 = vector.shape_cast %7 : vector<4xf32> to vector<4x1xf32>
    %cst_3 = arith.constant 2.560000e+02 : f32
    %9 = vector.broadcast %cst_3 : f32 to vector<4x1xf32>
    %10 = arith.divf %8, %9 : vector<4x1xf32>
    %cst_4 = arith.constant 0.000000e+00 : f32
    %11 = vector.broadcast %cst_4 : f32 to vector<12x128xf32>
    %12 = vector.extract_strided_slice %4 {offsets = [0, 51], sizes = [4, 128], strides = [1, 1]} : vector<4x230xf32> to vector<4x128xf32>
    %13 = tpu.concatenate %12, %11 in 0 : vector<4x128xf32>, vector<12x128xf32> -> vector<16x128xf32>
    %14 = arith.truncf %13 : vector<16x128xf32> to vector<16x128xbf16>
    %c0_5 = arith.constant 0 : index
    %c0_6 = arith.constant 0 : index
    %15 = vector.load %arg12[%c0_5, %c0_6] : memref<400x128xbf16, #tpu.memory_space<vmem>>, vector<16x128xbf16>
    tpu.vector_store %arg12[%c0_5, %c0_6], %14 {strides = array<i32>} : memref<400x128xbf16, #tpu.memory_space<vmem>>, vector<16x128xbf16>,
    %16 = vector.extract_strided_slice %4 {offsets = [0, 34], sizes = [4, 128], strides = [1, 1]} : vector<4x230xf32> to vector<4x128xf32>
    %c2 = arith.constant 2 : index
    %c0_7 = arith.constant 0 : index
    %17 = vector.load %arg3[%c2, %c0_7] : memref<8x128xf32, #tpu.memory_space<vmem>>, vector<1x128xf32>
    %cst_8 = arith.constant 0.000000e+00 : f32
    %18 = vector.broadcast %cst_8 : f32 to vector<1x128xf32>
    %19 = arith.cmpf ogt, %17, %18 : vector<1x128xf32>
    %cst_9 = arith.constant 0.000000e+00 : f32
    %20 = vector.shape_cast %19 : vector<1x128xi1> to vector<1x128xi1>
    %21 = vector.broadcast %20 : vector<1x128xi1> to vector<4x128xi1>
    %22 = vector.broadcast %cst_9 : f32 to vector<4x128xf32>
    %23 = arith.select %21, %16, %22 : vector<4x128xi1>, vector<4x128xf32>
    %24 = tpu.concatenate %23, %11 in 0 : vector<4x128xf32>, vector<12x128xf32> -> vector<16x128xf32>
    %25 = arith.truncf %24 : vector<16x128xf32> to vector<16x128xbf16>
    %c16 = arith.constant 16 : index
    %c0_10 = arith.constant 0 : index
    %26 = vector.load %arg12[%c16, %c0_10] : memref<400x128xbf16, #tpu.memory_space<vmem>>, vector<16x128xbf16>
    tpu.vector_store %arg12[%c16, %c0_10], %25 {strides = array<i32>} : memref<400x128xbf16, #tpu.memory_space<vmem>>, vector<16x128xbf16>,
    %27 = vector.extract_strided_slice %4 {offsets = [0, 35], sizes = [4, 128], strides = [1, 1]} : vector<4x230xf32> to vector<4x128xf32>
    %28 = tpu.concatenate %27, %11 in 0 : vector<4x128xf32>, vector<12x128xf32> -> vector<16x128xf32>
    %29 = arith.truncf %28 : vector<16x128xf32> to vector<16x128xbf16>
    %c32 = arith.constant 32 : index
    %c0_11 = arith.constant 0 : index
    %30 = vector.load %arg12[%c32, %c0_11] : memref<400x128xbf16, #tpu.memory_space<vmem>>, vector<16x128xbf16>
    tpu.vector_store %arg12[%c32, %c0_11], %29 {strides = array<i32>} : memref<400x128xbf16, #tpu.memory_space<vmem>>, vector<16x128xbf16>,
    %31 = vector.extract_strided_slice %4 {offsets = [0, 36], sizes = [4, 128], strides = [1, 1]} : vector<4x230xf32> to vector<4x128xf32>
    %c3 = arith.constant 3 : index
    %c0_12 = arith.constant 0 : index
    %32 = vector.load %arg3[%c3, %c0_12] : memref<8x128xf32, #tpu.memory_space<vmem>>, vector<1x128xf32>
    %cst_13 = arith.constant 0.000000e+00 : f32
    %33 = vector.broadcast %cst_13 : f32 to vector<1x128xf32>
    %34 = arith.cmpf ogt, %32, %33 : vector<1x128xf32>
    %cst_14 = arith.constant 0.000000e+00 : f32
    %35 = vector.shape_cast %34 : vector<1x128xi1> to vector<1x128xi1>
    %36 = vector.broadcast %35 : vector<1x128xi1> to vector<4x128xi1>
    %37 = vector.broadcast %cst_14 : f32 to vector<4x128xf32>
    %38 = arith.select %36, %31, %37 : vector<4x128xi1>, vector<4x128xf32>
    %39 = tpu.concatenate %38, %11 in 0 : vector<4x128xf32>, vector<12x128xf32> -> vector<16x128xf32>
    %40 = arith.truncf %39 : vector<16x128xf32> to vector<16x128xbf16>
    %c48 = arith.constant 48 : index
    %c0_15 = arith.constant 0 : index
    %41 = vector.load %arg12[%c48, %c0_15] : memref<400x128xbf16, #tpu.memory_space<vmem>>, vector<16x128xbf16>
    tpu.vector_store %arg12[%c48, %c0_15], %40 {strides = array<i32>} : memref<400x128xbf16, #tpu.memory_space<vmem>>, vector<16x128xbf16>,
    %42 = vector.extract_strided_slice %4 {offsets = [0, 50], sizes = [4, 128], strides = [1, 1]} : vector<4x230xf32> to vector<4x128xf32>
    %c2_16 = arith.constant 2 : index
    %c0_17 = arith.constant 0 : index
    %43 = vector.load %arg3[%c2_16, %c0_17] : memref<8x128xf32, #tpu.memory_space<vmem>>, vector<1x128xf32>
    %cst_18 = arith.constant 0.000000e+00 : f32
    %44 = vector.broadcast %cst_18 : f32 to vector<1x128xf32>
    %45 = arith.cmpf ogt, %43, %44 : vector<1x128xf32>
    %cst_19 = arith.constant 0.000000e+00 : f32
    %46 = vector.shape_cast %45 : vector<1x128xi1> to vector<1x128xi1>
    %47 = vector.broadcast %46 : vector<1x128xi1> to vector<4x128xi1>
    %48 = vector.broadcast %cst_19 : f32 to vector<4x128xf32>
    %49 = arith.select %47, %42, %48 : vector<4x128xi1>, vector<4x128xf32>
    %50 = tpu.concatenate %49, %11 in 0 : vector<4x128xf32>, vector<12x128xf32> -> vector<16x128xf32>
    %51 = arith.truncf %50 : vector<16x128xf32> to vector<16x128xbf16>
    %c64 = arith.constant 64 : index
    %c0_20 = arith.constant 0 : index
    %52 = vector.load %arg12[%c64, %c0_20] : memref<400x128xbf16, #tpu.memory_space<vmem>>, vector<16x128xbf16>
    tpu.vector_store %arg12[%c64, %c0_20], %51 {strides = array<i32>} : memref<400x128xbf16, #tpu.memory_space<vmem>>, vector<16x128xbf16>,
    %53 = vector.extract_strided_slice %4 {offsets = [0, 52], sizes = [4, 128], strides = [1, 1]} : vector<4x230xf32> to vector<4x128xf32>
    %c3_21 = arith.constant 3 : index
    %c0_22 = arith.constant 0 : index
    %54 = vector.load %arg3[%c3_21, %c0_22] : memref<8x128xf32, #tpu.memory_space<vmem>>, vector<1x128xf32>
    %cst_23 = arith.constant 0.000000e+00 : f32
    %55 = vector.broadcast %cst_23 : f32 to vector<1x128xf32>
    %56 = arith.cmpf ogt, %54, %55 : vector<1x128xf32>
    %cst_24 = arith.constant 0.000000e+00 : f32
    %57 = vector.shape_cast %56 : vector<1x128xi1> to vector<1x128xi1>
    %58 = vector.broadcast %57 : vector<1x128xi1> to vector<4x128xi1>
    %59 = vector.broadcast %cst_24 : f32 to vector<4x128xf32>
    %60 = arith.select %58, %53, %59 : vector<4x128xi1>, vector<4x128xf32>
    %61 = tpu.concatenate %60, %11 in 0 : vector<4x128xf32>, vector<12x128xf32> -> vector<16x128xf32>
    %62 = arith.truncf %61 : vector<16x128xf32> to vector<16x128xbf16>
    %c80 = arith.constant 80 : index
    %c0_25 = arith.constant 0 : index
    %63 = vector.load %arg12[%c80, %c0_25] : memref<400x128xbf16, #tpu.memory_space<vmem>>, vector<16x128xbf16>
    tpu.vector_store %arg12[%c80, %c0_25], %62 {strides = array<i32>} : memref<400x128xbf16, #tpu.memory_space<vmem>>, vector<16x128xbf16>,
    %64 = vector.extract_strided_slice %4 {offsets = [0, 66], sizes = [4, 128], strides = [1, 1]} : vector<4x230xf32> to vector<4x128xf32>
    %c2_26 = arith.constant 2 : index
    %c0_27 = arith.constant 0 : index
    %65 = vector.load %arg3[%c2_26, %c0_27] : memref<8x128xf32, #tpu.memory_space<vmem>>, vector<1x128xf32>
    %cst_28 = arith.constant 0.000000e+00 : f32
    %66 = vector.broadcast %cst_28 : f32 to vector<1x128xf32>
    %67 = arith.cmpf ogt, %65, %66 : vector<1x128xf32>
    %cst_29 = arith.constant 0.000000e+00 : f32
    %68 = vector.shape_cast %67 : vector<1x128xi1> to vector<1x128xi1>
    %69 = vector.broadcast %68 : vector<1x128xi1> to vector<4x128xi1>
    %70 = vector.broadcast %cst_29 : f32 to vector<4x128xf32>
    %71 = arith.select %69, %64, %70 : vector<4x128xi1>, vector<4x128xf32>
    %72 = tpu.concatenate %71, %11 in 0 : vector<4x128xf32>, vector<12x128xf32> -> vector<16x128xf32>
    %73 = arith.truncf %72 : vector<16x128xf32> to vector<16x128xbf16>
    %c96 = arith.constant 96 : index
    %c0_30 = arith.constant 0 : index
    %74 = vector.load %arg12[%c96, %c0_30] : memref<400x128xbf16, #tpu.memory_space<vmem>>, vector<16x128xbf16>
    tpu.vector_store %arg12[%c96, %c0_30], %73 {strides = array<i32>} : memref<400x128xbf16, #tpu.memory_space<vmem>>, vector<16x128xbf16>,
    %75 = vector.extract_strided_slice %4 {offsets = [0, 67], sizes = [4, 128], strides = [1, 1]} : vector<4x230xf32> to vector<4x128xf32>
    %76 = tpu.concatenate %75, %11 in 0 : vector<4x128xf32>, vector<12x128xf32> -> vector<16x128xf32>
    %77 = arith.truncf %76 : vector<16x128xf32> to vector<16x128xbf16>
    %c112 = arith.constant 112 : index
    %c0_31 = arith.constant 0 : index
    %78 = vector.load %arg12[%c112, %c0_31] : memref<400x128xbf16, #tpu.memory_space<vmem>>, vector<16x128xbf16>
    tpu.vector_store %arg12[%c112, %c0_31], %77 {strides = array<i32>} : memref<400x128xbf16, #tpu.memory_space<vmem>>, vector<16x128xbf16>,
    %79 = vector.extract_strided_slice %4 {offsets = [0, 68], sizes = [4, 128], strides = [1, 1]} : vector<4x230xf32> to vector<4x128xf32>
    %c3_32 = arith.constant 3 : index
    %c0_33 = arith.constant 0 : index
    %80 = vector.load %arg3[%c3_32, %c0_33] : memref<8x128xf32, #tpu.memory_space<vmem>>, vector<1x128xf32>
    %cst_34 = arith.constant 0.000000e+00 : f32
    %81 = vector.broadcast %cst_34 : f32 to vector<1x128xf32>
    %82 = arith.cmpf ogt, %80, %81 : vector<1x128xf32>
    %cst_35 = arith.constant 0.000000e+00 : f32
    %83 = vector.shape_cast %82 : vector<1x128xi1> to vector<1x128xi1>
    %84 = vector.broadcast %83 : vector<1x128xi1> to vector<4x128xi1>
    %85 = vector.broadcast %cst_35 : f32 to vector<4x128xf32>
    %86 = arith.select %84, %79, %85 : vector<4x128xi1>, vector<4x128xf32>
    %87 = tpu.concatenate %86, %11 in 0 : vector<4x128xf32>, vector<12x128xf32> -> vector<16x128xf32>
    %88 = arith.truncf %87 : vector<16x128xf32> to vector<16x128xbf16>
    %c128 = arith.constant 128 : index
    %c0_36 = arith.constant 0 : index
    %89 = vector.load %arg12[%c128, %c0_36] : memref<400x128xbf16, #tpu.memory_space<vmem>>, vector<16x128xbf16>
    tpu.vector_store %arg12[%c128, %c0_36], %88 {strides = array<i32>} : memref<400x128xbf16, #tpu.memory_space<vmem>>, vector<16x128xbf16>,
    %90 = vector.extract_strided_slice %4 {offsets = [0, 17], sizes = [4, 128], strides = [1, 1]} : vector<4x230xf32> to vector<4x128xf32>
    %c1 = arith.constant 1 : index
    %c0_37 = arith.constant 0 : index
    %91 = vector.load %arg3[%c1, %c0_37] : memref<8x128xf32, #tpu.memory_space<vmem>>, vector<1x128xf32>
    %cst_38 = arith.constant 0.000000e+00 : f32
    %92 = vector.broadcast %cst_38 : f32 to vector<1x128xf32>
    %93 = arith.cmpf ogt, %91, %92 : vector<1x128xf32>
    %cst_39 = arith.constant 0.000000e+00 : f32
    %94 = vector.shape_cast %93 : vector<1x128xi1> to vector<1x128xi1>
    %95 = vector.broadcast %94 : vector<1x128xi1> to vector<4x128xi1>
    %96 = vector.broadcast %cst_39 : f32 to vector<4x128xf32>
    %97 = arith.select %95, %90, %96 : vector<4x128xi1>, vector<4x128xf32>
    %98 = tpu.concatenate %97, %11 in 0 : vector<4x128xf32>, vector<12x128xf32> -> vector<16x128xf32>
    %99 = arith.truncf %98 : vector<16x128xf32> to vector<16x128xbf16>
    %c144 = arith.constant 144 : index
    %c0_40 = arith.constant 0 : index
    %100 = vector.load %arg12[%c144, %c0_40] : memref<400x128xbf16, #tpu.memory_space<vmem>>, vector<16x128xbf16>
    tpu.vector_store %arg12[%c144, %c0_40], %99 {strides = array<i32>} : memref<400x128xbf16, #tpu.memory_space<vmem>>, vector<16x128xbf16>,
    %101 = vector.extract_strided_slice %4 {offsets = [0, 19], sizes = [4, 128], strides = [1, 1]} : vector<4x230xf32> to vector<4x128xf32>
    %102 = tpu.concatenate %101, %11 in 0 : vector<4x128xf32>, vector<12x128xf32> -> vector<16x128xf32>
    %103 = arith.truncf %102 : vector<16x128xf32> to vector<16x128xbf16>
    %c160 = arith.constant 160 : index
    %c0_41 = arith.constant 0 : index
    %104 = vector.load %arg12[%c160, %c0_41] : memref<400x128xbf16, #tpu.memory_space<vmem>>, vector<16x128xbf16>
    tpu.vector_store %arg12[%c160, %c0_41], %103 {strides = array<i32>} : memref<400x128xbf16, #tpu.memory_space<vmem>>, vector<16x128xbf16>,
    %105 = vector.extract_strided_slice %4 {offsets = [0, 21], sizes = [4, 128], strides = [1, 1]} : vector<4x230xf32> to vector<4x128xf32>
    %c4 = arith.constant 4 : index
    %c0_42 = arith.constant 0 : index
    %106 = vector.load %arg3[%c4, %c0_42] : memref<8x128xf32, #tpu.memory_space<vmem>>, vector<1x128xf32>
    %cst_43 = arith.constant 0.000000e+00 : f32
    %107 = vector.broadcast %cst_43 : f32 to vector<1x128xf32>
    %108 = arith.cmpf ogt, %106, %107 : vector<1x128xf32>
    %cst_44 = arith.constant 0.000000e+00 : f32
    %109 = vector.shape_cast %108 : vector<1x128xi1> to vector<1x128xi1>
    %110 = vector.broadcast %109 : vector<1x128xi1> to vector<4x128xi1>
    %111 = vector.broadcast %cst_44 : f32 to vector<4x128xf32>
    %112 = arith.select %110, %105, %111 : vector<4x128xi1>, vector<4x128xf32>
    %113 = tpu.concatenate %112, %11 in 0 : vector<4x128xf32>, vector<12x128xf32> -> vector<16x128xf32>
    %114 = arith.truncf %113 : vector<16x128xf32> to vector<16x128xbf16>
    %c176 = arith.constant 176 : index
    %c0_45 = arith.constant 0 : index
    %115 = vector.load %arg12[%c176, %c0_45] : memref<400x128xbf16, #tpu.memory_space<vmem>>, vector<16x128xbf16>
    tpu.vector_store %arg12[%c176, %c0_45], %114 {strides = array<i32>} : memref<400x128xbf16, #tpu.memory_space<vmem>>, vector<16x128xbf16>,
    %116 = vector.extract_strided_slice %4 {offsets = [0, 49], sizes = [4, 128], strides = [1, 1]} : vector<4x230xf32> to vector<4x128xf32>
    %c1_46 = arith.constant 1 : index
    %c0_47 = arith.constant 0 : index
    %117 = vector.load %arg3[%c1_46, %c0_47] : memref<8x128xf32, #tpu.memory_space<vmem>>, vector<1x128xf32>
    %cst_48 = arith.constant 0.000000e+00 : f32
    %118 = vector.broadcast %cst_48 : f32 to vector<1x128xf32>
    %119 = arith.cmpf ogt, %117, %118 : vector<1x128xf32>
    %cst_49 = arith.constant 0.000000e+00 : f32
    %120 = vector.shape_cast %119 : vector<1x128xi1> to vector<1x128xi1>
    %121 = vector.broadcast %120 : vector<1x128xi1> to vector<4x128xi1>
    %122 = vector.broadcast %cst_49 : f32 to vector<4x128xf32>
    %123 = arith.select %121, %116, %122 : vector<4x128xi1>, vector<4x128xf32>
    %124 = tpu.concatenate %123, %11 in 0 : vector<4x128xf32>, vector<12x128xf32> -> vector<16x128xf32>
    %125 = arith.truncf %124 : vector<16x128xf32> to vector<16x128xbf16>
    %c192 = arith.constant 192 : index
    %c0_50 = arith.constant 0 : index
    %126 = vector.load %arg12[%c192, %c0_50] : memref<400x128xbf16, #tpu.memory_space<vmem>>, vector<16x128xbf16>
    tpu.vector_store %arg12[%c192, %c0_50], %125 {strides = array<i32>} : memref<400x128xbf16, #tpu.memory_space<vmem>>, vector<16x128xbf16>,
    %127 = vector.extract_strided_slice %4 {offsets = [0, 53], sizes = [4, 128], strides = [1, 1]} : vector<4x230xf32> to vector<4x128xf32>
    %c4_51 = arith.constant 4 : index
    %c0_52 = arith.constant 0 : index
    %128 = vector.load %arg3[%c4_51, %c0_52] : memref<8x128xf32, #tpu.memory_space<vmem>>, vector<1x128xf32>
    %cst_53 = arith.constant 0.000000e+00 : f32
    %129 = vector.broadcast %cst_53 : f32 to vector<1x128xf32>
    %130 = arith.cmpf ogt, %128, %129 : vector<1x128xf32>
    %cst_54 = arith.constant 0.000000e+00 : f32
    %131 = vector.shape_cast %130 : vector<1x128xi1> to vector<1x128xi1>
    %132 = vector.broadcast %131 : vector<1x128xi1> to vector<4x128xi1>
    %133 = vector.broadcast %cst_54 : f32 to vector<4x128xf32>
    %134 = arith.select %132, %127, %133 : vector<4x128xi1>, vector<4x128xf32>
    %135 = tpu.concatenate %134, %11 in 0 : vector<4x128xf32>, vector<12x128xf32> -> vector<16x128xf32>
    %136 = arith.truncf %135 : vector<16x128xf32> to vector<16x128xbf16>
    %c208 = arith.constant 208 : index
    %c0_55 = arith.constant 0 : index
    %137 = vector.load %arg12[%c208, %c0_55] : memref<400x128xbf16, #tpu.memory_space<vmem>>, vector<16x128xbf16>
    tpu.vector_store %arg12[%c208, %c0_55], %136 {strides = array<i32>} : memref<400x128xbf16, #tpu.memory_space<vmem>>, vector<16x128xbf16>,
    %138 = vector.extract_strided_slice %4 {offsets = [0, 81], sizes = [4, 128], strides = [1, 1]} : vector<4x230xf32> to vector<4x128xf32>
    %c1_56 = arith.constant 1 : index
    %c0_57 = arith.constant 0 : index
    %139 = vector.load %arg3[%c1_56, %c0_57] : memref<8x128xf32, #tpu.memory_space<vmem>>, vector<1x128xf32>
    %cst_58 = arith.constant 0.000000e+00 : f32
    %140 = vector.broadcast %cst_58 : f32 to vector<1x128xf32>
    %141 = arith.cmpf ogt, %139, %140 : vector<1x128xf32>
    %cst_59 = arith.constant 0.000000e+00 : f32
    %142 = vector.shape_cast %141 : vector<1x128xi1> to vector<1x128xi1>
    %143 = vector.broadcast %142 : vector<1x128xi1> to vector<4x128xi1>
    %144 = vector.broadcast %cst_59 : f32 to vector<4x128xf32>
    %145 = arith.select %143, %138, %144 : vector<4x128xi1>, vector<4x128xf32>
    %146 = tpu.concatenate %145, %11 in 0 : vector<4x128xf32>, vector<12x128xf32> -> vector<16x128xf32>
    %147 = arith.truncf %146 : vector<16x128xf32> to vector<16x128xbf16>
    %c224 = arith.constant 224 : index
    %c0_60 = arith.constant 0 : index
    %148 = vector.load %arg12[%c224, %c0_60] : memref<400x128xbf16, #tpu.memory_space<vmem>>, vector<16x128xbf16>
    tpu.vector_store %arg12[%c224, %c0_60], %147 {strides = array<i32>} : memref<400x128xbf16, #tpu.memory_space<vmem>>, vector<16x128xbf16>,
    %149 = vector.extract_strided_slice %4 {offsets = [0, 83], sizes = [4, 128], strides = [1, 1]} : vector<4x230xf32> to vector<4x128xf32>
    %150 = tpu.concatenate %149, %11 in 0 : vector<4x128xf32>, vector<12x128xf32> -> vector<16x128xf32>
    %151 = arith.truncf %150 : vector<16x128xf32> to vector<16x128xbf16>
    %c240 = arith.constant 240 : index
    %c0_61 = arith.constant 0 : index
    %152 = vector.load %arg12[%c240, %c0_61] : memref<400x128xbf16, #tpu.memory_space<vmem>>, vector<16x128xbf16>
    tpu.vector_store %arg12[%c240, %c0_61], %151 {strides = array<i32>} : memref<400x128xbf16, #tpu.memory_space<vmem>>, vector<16x128xbf16>,
    %153 = vector.extract_strided_slice %4 {offsets = [0, 85], sizes = [4, 128], strides = [1, 1]} : vector<4x230xf32> to vector<4x128xf32>
    %c4_62 = arith.constant 4 : index
    %c0_63 = arith.constant 0 : index
    %154 = vector.load %arg3[%c4_62, %c0_63] : memref<8x128xf32, #tpu.memory_space<vmem>>, vector<1x128xf32>
    %cst_64 = arith.constant 0.000000e+00 : f32
    %155 = vector.broadcast %cst_64 : f32 to vector<1x128xf32>
    %156 = arith.cmpf ogt, %154, %155 : vector<1x128xf32>
    %cst_65 = arith.constant 0.000000e+00 : f32
    %157 = vector.shape_cast %156 : vector<1x128xi1> to vector<1x128xi1>
    %158 = vector.broadcast %157 : vector<1x128xi1> to vector<4x128xi1>
    %159 = vector.broadcast %cst_65 : f32 to vector<4x128xf32>
    %160 = arith.select %158, %153, %159 : vector<4x128xi1>, vector<4x128xf32>
    %161 = tpu.concatenate %160, %11 in 0 : vector<4x128xf32>, vector<12x128xf32> -> vector<16x128xf32>
    %162 = arith.truncf %161 : vector<16x128xf32> to vector<16x128xbf16>
    %c256 = arith.constant 256 : index
    %c0_66 = arith.constant 0 : index
    %163 = vector.load %arg12[%c256, %c0_66] : memref<400x128xbf16, #tpu.memory_space<vmem>>, vector<16x128xbf16>
    tpu.vector_store %arg12[%c256, %c0_66], %162 {strides = array<i32>} : memref<400x128xbf16, #tpu.memory_space<vmem>>, vector<16x128xbf16>,
    %164 = vector.extract_strided_slice %4 {offsets = [0, 0], sizes = [4, 128], strides = [1, 1]} : vector<4x230xf32> to vector<4x128xf32>
    %c0_67 = arith.constant 0 : index
    %c0_68 = arith.constant 0 : index
    %165 = vector.load %arg3[%c0_67, %c0_68] : memref<8x128xf32, #tpu.memory_space<vmem>>, vector<1x128xf32>
    %cst_69 = arith.constant 0.000000e+00 : f32
    %166 = vector.broadcast %cst_69 : f32 to vector<1x128xf32>
    %167 = arith.cmpf ogt, %165, %166 : vector<1x128xf32>
    %cst_70 = arith.constant 0.000000e+00 : f32
    %168 = vector.shape_cast %167 : vector<1x128xi1> to vector<1x128xi1>
    %169 = vector.broadcast %168 : vector<1x128xi1> to vector<4x128xi1>
    %170 = vector.broadcast %cst_70 : f32 to vector<4x128xf32>
    %171 = arith.select %169, %164, %170 : vector<4x128xi1>, vector<4x128xf32>
    %172 = tpu.concatenate %171, %11 in 0 : vector<4x128xf32>, vector<12x128xf32> -> vector<16x128xf32>
    %173 = arith.truncf %172 : vector<16x128xf32> to vector<16x128xbf16>
    %c272 = arith.constant 272 : index
    %c0_71 = arith.constant 0 : index
    %174 = vector.load %arg12[%c272, %c0_71] : memref<400x128xbf16, #tpu.memory_space<vmem>>, vector<16x128xbf16>
    tpu.vector_store %arg12[%c272, %c0_71], %173 {strides = array<i32>} : memref<400x128xbf16, #tpu.memory_space<vmem>>, vector<16x128xbf16>,
    %175 = vector.extract_strided_slice %4 {offsets = [0, 3], sizes = [4, 128], strides = [1, 1]} : vector<4x230xf32> to vector<4x128xf32>
    %176 = tpu.concatenate %175, %11 in 0 : vector<4x128xf32>, vector<12x128xf32> -> vector<16x128xf32>
    %177 = arith.truncf %176 : vector<16x128xf32> to vector<16x128xbf16>
    %c288 = arith.constant 288 : index
    %c0_72 = arith.constant 0 : index
    %178 = vector.load %arg12[%c288, %c0_72] : memref<400x128xbf16, #tpu.memory_space<vmem>>, vector<16x128xbf16>
    tpu.vector_store %arg12[%c288, %c0_72], %177 {strides = array<i32>} : memref<400x128xbf16, #tpu.memory_space<vmem>>, vector<16x128xbf16>,
    %179 = vector.extract_strided_slice %4 {offsets = [0, 6], sizes = [4, 128], strides = [1, 1]} : vector<4x230xf32> to vector<4x128xf32>
    %c5 = arith.constant 5 : index
    %c0_73 = arith.constant 0 : index
    %180 = vector.load %arg3[%c5, %c0_73] : memref<8x128xf32, #tpu.memory_space<vmem>>, vector<1x128xf32>
    %cst_74 = arith.constant 0.000000e+00 : f32
    %181 = vector.broadcast %cst_74 : f32 to vector<1x128xf32>
    %182 = arith.cmpf ogt, %180, %181 : vector<1x128xf32>
    %cst_75 = arith.constant 0.000000e+00 : f32
    %183 = vector.shape_cast %182 : vector<1x128xi1> to vector<1x128xi1>
    %184 = vector.broadcast %183 : vector<1x128xi1> to vector<4x128xi1>
    %185 = vector.broadcast %cst_75 : f32 to vector<4x128xf32>
    %186 = arith.select %184, %179, %185 : vector<4x128xi1>, vector<4x128xf32>
    %187 = tpu.concatenate %186, %11 in 0 : vector<4x128xf32>, vector<12x128xf32> -> vector<16x128xf32>
    %188 = arith.truncf %187 : vector<16x128xf32> to vector<16x128xbf16>
    %c304 = arith.constant 304 : index
    %c0_76 = arith.constant 0 : index
    %189 = vector.load %arg12[%c304, %c0_76] : memref<400x128xbf16, #tpu.memory_space<vmem>>, vector<16x128xbf16>
    tpu.vector_store %arg12[%c304, %c0_76], %188 {strides = array<i32>} : memref<400x128xbf16, #tpu.memory_space<vmem>>, vector<16x128xbf16>,
    %190 = vector.extract_strided_slice %4 {offsets = [0, 48], sizes = [4, 128], strides = [1, 1]} : vector<4x230xf32> to vector<4x128xf32>
    %c0_77 = arith.constant 0 : index
    %c0_78 = arith.constant 0 : index
    %191 = vector.load %arg3[%c0_77, %c0_78] : memref<8x128xf32, #tpu.memory_space<vmem>>, vector<1x128xf32>
    %cst_79 = arith.constant 0.000000e+00 : f32
    %192 = vector.broadcast %cst_79 : f32 to vector<1x128xf32>
    %193 = arith.cmpf ogt, %191, %192 : vector<1x128xf32>
    %cst_80 = arith.constant 0.000000e+00 : f32
    %194 = vector.shape_cast %193 : vector<1x128xi1> to vector<1x128xi1>
    %195 = vector.broadcast %194 : vector<1x128xi1> to vector<4x128xi1>
    %196 = vector.broadcast %cst_80 : f32 to vector<4x128xf32>
    %197 = arith.select %195, %190, %196 : vector<4x128xi1>, vector<4x128xf32>
    %198 = tpu.concatenate %197, %11 in 0 : vector<4x128xf32>, vector<12x128xf32> -> vector<16x128xf32>
    %199 = arith.truncf %198 : vector<16x128xf32> to vector<16x128xbf16>
    %c320 = arith.constant 320 : index
    %c0_81 = arith.constant 0 : index
    %200 = vector.load %arg12[%c320, %c0_81] : memref<400x128xbf16, #tpu.memory_space<vmem>>, vector<16x128xbf16>
    tpu.vector_store %arg12[%c320, %c0_81], %199 {strides = array<i32>} : memref<400x128xbf16, #tpu.memory_space<vmem>>, vector<16x128xbf16>,
    %201 = vector.extract_strided_slice %4 {offsets = [0, 54], sizes = [4, 128], strides = [1, 1]} : vector<4x230xf32> to vector<4x128xf32>
    %c5_82 = arith.constant 5 : index
    %c0_83 = arith.constant 0 : index
    %202 = vector.load %arg3[%c5_82, %c0_83] : memref<8x128xf32, #tpu.memory_space<vmem>>, vector<1x128xf32>
    %cst_84 = arith.constant 0.000000e+00 : f32
    %203 = vector.broadcast %cst_84 : f32 to vector<1x128xf32>
    %204 = arith.cmpf ogt, %202, %203 : vector<1x128xf32>
    %cst_85 = arith.constant 0.000000e+00 : f32
    %205 = vector.shape_cast %204 : vector<1x128xi1> to vector<1x128xi1>
    %206 = vector.broadcast %205 : vector<1x128xi1> to vector<4x128xi1>
    %207 = vector.broadcast %cst_85 : f32 to vector<4x128xf32>
    %208 = arith.select %206, %201, %207 : vector<4x128xi1>, vector<4x128xf32>
    %209 = tpu.concatenate %208, %11 in 0 : vector<4x128xf32>, vector<12x128xf32> -> vector<16x128xf32>
    %210 = arith.truncf %209 : vector<16x128xf32> to vector<16x128xbf16>
    %c336 = arith.constant 336 : index
    %c0_86 = arith.constant 0 : index
    %211 = vector.load %arg12[%c336, %c0_86] : memref<400x128xbf16, #tpu.memory_space<vmem>>, vector<16x128xbf16>
    tpu.vector_store %arg12[%c336, %c0_86], %210 {strides = array<i32>} : memref<400x128xbf16, #tpu.memory_space<vmem>>, vector<16x128xbf16>,
    %212 = vector.extract_strided_slice %4 {offsets = [0, 96], sizes = [4, 128], strides = [1, 1]} : vector<4x230xf32> to vector<4x128xf32>
    %c0_87 = arith.constant 0 : index
    %c0_88 = arith.constant 0 : index
    %213 = vector.load %arg3[%c0_87, %c0_88] : memref<8x128xf32, #tpu.memory_space<vmem>>, vector<1x128xf32>
    %cst_89 = arith.constant 0.000000e+00 : f32
    %214 = vector.broadcast %cst_89 : f32 to vector<1x128xf32>
    %215 = arith.cmpf ogt, %213, %214 : vector<1x128xf32>
    %cst_90 = arith.constant 0.000000e+00 : f32
    %216 = vector.shape_cast %215 : vector<1x128xi1> to vector<1x128xi1>
    %217 = vector.broadcast %216 : vector<1x128xi1> to vector<4x128xi1>
    %218 = vector.broadcast %cst_90 : f32 to vector<4x128xf32>
    %219 = arith.select %217, %212, %218 : vector<4x128xi1>, vector<4x128xf32>
    %220 = tpu.concatenate %219, %11 in 0 : vector<4x128xf32>, vector<12x128xf32> -> vector<16x128xf32>
    %221 = arith.truncf %220 : vector<16x128xf32> to vector<16x128xbf16>
    %c352 = arith.constant 352 : index
    %c0_91 = arith.constant 0 : index
    %222 = vector.load %arg12[%c352, %c0_91] : memref<400x128xbf16, #tpu.memory_space<vmem>>, vector<16x128xbf16>
    tpu.vector_store %arg12[%c352, %c0_91], %221 {strides = array<i32>} : memref<400x128xbf16, #tpu.memory_space<vmem>>, vector<16x128xbf16>,
    %223 = vector.extract_strided_slice %4 {offsets = [0, 99], sizes = [4, 128], strides = [1, 1]} : vector<4x230xf32> to vector<4x128xf32>
    %224 = tpu.concatenate %223, %11 in 0 : vector<4x128xf32>, vector<12x128xf32> -> vector<16x128xf32>
    %225 = arith.truncf %224 : vector<16x128xf32> to vector<16x128xbf16>
    %c368 = arith.constant 368 : index
    %c0_92 = arith.constant 0 : index
    %226 = vector.load %arg12[%c368, %c0_92] : memref<400x128xbf16, #tpu.memory_space<vmem>>, vector<16x128xbf16>
    tpu.vector_store %arg12[%c368, %c0_92], %225 {strides = array<i32>} : memref<400x128xbf16, #tpu.memory_space<vmem>>, vector<16x128xbf16>,
    %227 = vector.extract_strided_slice %4 {offsets = [0, 102], sizes = [4, 128], strides = [1, 1]} : vector<4x230xf32> to vector<4x128xf32>
    %c5_93 = arith.constant 5 : index
    %c0_94 = arith.constant 0 : index
    %228 = vector.load %arg3[%c5_93, %c0_94] : memref<8x128xf32, #tpu.memory_space<vmem>>, vector<1x128xf32>
    %cst_95 = arith.constant 0.000000e+00 : f32
    %229 = vector.broadcast %cst_95 : f32 to vector<1x128xf32>
    %230 = arith.cmpf ogt, %228, %229 : vector<1x128xf32>
    %cst_96 = arith.constant 0.000000e+00 : f32
    %231 = vector.shape_cast %230 : vector<1x128xi1> to vector<1x128xi1>
    %232 = vector.broadcast %231 : vector<1x128xi1> to vector<4x128xi1>
    %233 = vector.broadcast %cst_96 : f32 to vector<4x128xf32>
    %234 = arith.select %232, %227, %233 : vector<4x128xi1>, vector<4x128xf32>
    %235 = tpu.concatenate %234, %11 in 0 : vector<4x128xf32>, vector<12x128xf32> -> vector<16x128xf32>
    %236 = arith.truncf %235 : vector<16x128xf32> to vector<16x128xbf16>
    %c384 = arith.constant 384 : index
    %c0_97 = arith.constant 0 : index
    %237 = vector.load %arg12[%c384, %c0_97] : memref<400x128xbf16, #tpu.memory_space<vmem>>, vector<16x128xbf16>
    tpu.vector_store %arg12[%c384, %c0_97], %236 {strides = array<i32>} : memref<400x128xbf16, #tpu.memory_space<vmem>>, vector<16x128xbf16>,
    %c0_98 = arith.constant 0 : index
    %c0_99 = arith.constant 0 : index
    %238 = vector.load %arg4[%c0_98, %c0_99] : memref<128x400xbf16, #tpu.memory_space<vmem>>, vector<128x400xbf16>
    %c0_100 = arith.constant 0 : index
    %c0_101 = arith.constant 0 : index
    %239 = vector.load %arg12[%c0_100, %c0_101] : memref<400x128xbf16, #tpu.memory_space<vmem>>, vector<400x128xbf16>
    %cst_102 = arith.constant dense<0.000000e+00> : vector<128x128xf32>
    %240 = tpu.matmul %238, %239, %cst_102 {dimension_numbers = #tpu.dot_dimension_numbers<[1], [0], [0], [1], [0, 0, 1, 1], [], []>} : vector<128x400xbf16>, vector<400x128xbf16>, vector<128x128xf32> -> vector<128x128xf32>
    %c0_103 = arith.constant 0 : index
    %c0_104 = arith.constant 0 : index
    %241 = vector.load %arg5[%c0_103, %c0_104] : memref<128x1xf32, #tpu.memory_space<vmem>>, vector<128x1xf32>
    %242 = vector.broadcast %241 : vector<128x1xf32> to vector<128x128xf32>
    %243 = arith.addf %240, %242 : vector<128x128xf32>
    %cst_105 = arith.constant 0.000000e+00 : f32
    %244 = vector.broadcast %cst_105 : f32 to vector<128x128xf32>
    %245 = arith.maximumf %243, %244 : vector<128x128xf32>
    %c0_106 = arith.constant 0 : index
    %c0_107 = arith.constant 0 : index
    %246 = vector.load %arg6[%c0_106, %c0_107] : memref<32x4xf32, #tpu.memory_space<vmem>>, vector<32x4xf32>
    %cst_108 = arith.constant dense<0.000000e+00> : vector<32x1xf32>
    %247 = tpu.matmul %246, %10, %cst_108 {dimension_numbers = #tpu.dot_dimension_numbers<[1], [0], [0], [1], [0, 0, 1, 1], [], []>} : vector<32x4xf32>, vector<4x1xf32>, vector<32x1xf32> -> vector<32x1xf32>
    %c0_109 = arith.constant 0 : index
    %c0_110 = arith.constant 0 : index
    %248 = vector.load %arg7[%c0_109, %c0_110] : memref<32x1xf32, #tpu.memory_space<vmem>>, vector<32x1xf32>
    %249 = arith.addf %247, %248 : vector<32x1xf32>
    %cst_111 = arith.constant 0.000000e+00 : f32
    %250 = vector.broadcast %cst_111 : f32 to vector<32x1xf32>
    %251 = arith.maximumf %249, %250 : vector<32x1xf32>
    %c0_112 = arith.constant 0 : index
    %c0_113 = arith.constant 0 : index
    %252 = vector.load %arg8[%c0_112, %c0_113] : memref<32x128xbf16, #tpu.memory_space<vmem>>, vector<32x128xbf16>
    %253 = arith.truncf %245 : vector<128x128xf32> to vector<128x128xbf16>
    %cst_114 = arith.constant dense<0.000000e+00> : vector<32x128xf32>
    %254 = tpu.matmul %252, %253, %cst_114 {dimension_numbers = #tpu.dot_dimension_numbers<[1], [0], [0], [1], [0, 0, 1, 1], [], []>} : vector<32x128xbf16>, vector<128x128xbf16>, vector<32x128xf32> -> vector<32x128xf32>
    %c0_115 = arith.constant 0 : index
    %c0_116 = arith.constant 0 : index
    %255 = vector.load %arg9[%c0_115, %c0_116] : memref<32x32xf32, #tpu.memory_space<vmem>>, vector<32x32xf32>
    %cst_117 = arith.constant dense<0.000000e+00> : vector<32x1xf32>
    %256 = tpu.matmul %255, %251, %cst_117 {dimension_numbers = #tpu.dot_dimension_numbers<[1], [0], [0], [1], [0, 0, 1, 1], [], []>} : vector<32x32xf32>, vector<32x1xf32>, vector<32x1xf32> -> vector<32x1xf32>
    %257 = vector.broadcast %256 : vector<32x1xf32> to vector<32x128xf32>
    %258 = arith.addf %254, %257 : vector<32x128xf32>
    %c0_118 = arith.constant 0 : index
    %c0_119 = arith.constant 0 : index
    %259 = vector.load %arg10[%c0_118, %c0_119] : memref<32x1xf32, #tpu.memory_space<vmem>>, vector<32x1xf32>
    %260 = vector.broadcast %259 : vector<32x1xf32> to vector<32x128xf32>
    %261 = arith.addf %258, %260 : vector<32x128xf32>
    %cst_120 = arith.constant 0.000000e+00 : f32
    %262 = vector.broadcast %cst_120 : f32 to vector<32x128xf32>
    %263 = arith.maximumf %261, %262 : vector<32x128xf32>
    %c0_121 = arith.constant 0 : index
    %c0_122 = arith.constant 0 : index
    %c0_123 = arith.constant 0 : index
    %264 = vector.load %arg11[%c0_121, %c0_122, %c0_123] : memref<1x32x128xf32, #tpu.memory_space<vmem>>, vector<1x32x128xf32>
    %265 = vector.shape_cast %264 : vector<1x32x128xf32> to vector<32x128xf32>
    %266 = vector.shape_cast %263 : vector<32x128xf32> to vector<1x32x128xf32>
    tpu.vector_store %arg11[%c0_121, %c0_122, %c0_123], %266 {strides = array<i32>} : memref<1x32x128xf32, #tpu.memory_space<vmem>>, vector<1x32x128xf32>,
    return
  }
  func.func @transform_0(%arg0: i32, %arg1: i32) -> (i32, i32, i32) {
    %c0_i32 = arith.constant 0 : i32
    %c0_i32_0 = arith.constant 0 : i32
    %c0_i32_1 = arith.constant 0 : i32
    return %arg0, %c0_i32, %c0_i32_0 : i32, i32, i32
  }
  func.func @transform_1(%arg0: i32, %arg1: i32) -> (i32, i32) {
    %c0_i32 = arith.constant 0 : i32
    %c0_i32_0 = arith.constant 0 : i32
    return %c0_i32, %arg1 : i32, i32
  }
  func.func @transform_2(%arg0: i32, %arg1: i32) -> (i32, i32) {
    %c0_i32 = arith.constant 0 : i32
    %c0_i32_0 = arith.constant 0 : i32
    %c0_i32_1 = arith.constant 0 : i32
    return %c0_i32, %c0_i32_0 : i32, i32
  }
  func.func @transform_3(%arg0: i32, %arg1: i32) -> (i32, i32) {
    %c0_i32 = arith.constant 0 : i32
    %c0_i32_0 = arith.constant 0 : i32
    %c0_i32_1 = arith.constant 0 : i32
    return %c0_i32, %c0_i32_0 : i32, i32
  }
  func.func @transform_4(%arg0: i32, %arg1: i32) -> (i32, i32) {
    %c0_i32 = arith.constant 0 : i32
    %c0_i32_0 = arith.constant 0 : i32
    %c0_i32_1 = arith.constant 0 : i32
    return %c0_i32, %c0_i32_0 : i32, i32
  }
  func.func @transform_5(%arg0: i32, %arg1: i32) -> (i32, i32) {
    %c0_i32 = arith.constant 0 : i32
    %c0_i32_0 = arith.constant 0 : i32
    %c0_i32_1 = arith.constant 0 : i32
    return %c0_i32, %c0_i32_0 : i32, i32
  }
  func.func @transform_6(%arg0: i32, %arg1: i32) -> (i32, i32) {
    %c0_i32 = arith.constant 0 : i32
    %c0_i32_0 = arith.constant 0 : i32
    %c0_i32_1 = arith.constant 0 : i32
    return %c0_i32, %c0_i32_0 : i32, i32
  }
  func.func @transform_7(%arg0: i32, %arg1: i32) -> (i32, i32) {
    %c0_i32 = arith.constant 0 : i32
    %c0_i32_0 = arith.constant 0 : i32
    %c0_i32_1 = arith.constant 0 : i32
    return %c0_i32, %c0_i32_0 : i32, i32
  }
  func.func @transform_8(%arg0: i32, %arg1: i32) -> (i32, i32) {
    %c0_i32 = arith.constant 0 : i32
    %c0_i32_0 = arith.constant 0 : i32
    %c0_i32_1 = arith.constant 0 : i32
    return %c0_i32, %c0_i32_0 : i32, i32
  }
  func.func @transform_9(%arg0: i32, %arg1: i32) -> (i32, i32, i32) {
    %c0_i32 = arith.constant 0 : i32
    %c0_i32_0 = arith.constant 0 : i32
    return %arg0, %c0_i32, %arg1 : i32, i32, i32
  }
}

</mosaic_0001>

<llo_original>
// kernel: fwd.1
$region0: #{fwd.1}
  #allocation0 [shape = 'u32[]', space=smem, size = 0x4, offset = 0x4, fixed_abs, tag = 'smem constant byte address 0x4 - core index']
  #allocation1 [shape = 'u32[144,128]{1,0:T(1,128)}', space=vmem, size = 0x12000, scoped, tag = 'internal scratch']
  #allocation2 [shape = 'bf16[400,128]{1,0:T(16,128)(2,1)}', space=vmem, size = 0x19000, scoped, tag = 'scratch operand']
  %s0 = inlined_call_operand.hbm [shape: f32[2,4,358], index: 0, kind: input, shape index: {}]
  %s1 = inlined_call_operand.hbm [shape: f32[8,256], index: 1, kind: input, shape index: {}]
  %s2 = inlined_call_operand.hbm [shape: bf16[128,400], index: 2, kind: input, shape index: {}]
  %s3 = inlined_call_operand.hbm [shape: f32[128,1], index: 3, kind: input, shape index: {}]
  %s4 = inlined_call_operand.hbm [shape: f32[32,4], index: 4, kind: input, shape index: {}]
  %s5 = inlined_call_operand.hbm [shape: f32[32,1], index: 5, kind: input, shape index: {}]
  %s6 = inlined_call_operand.hbm [shape: bf16[32,128], index: 6, kind: input, shape index: {}]
  %s7 = inlined_call_operand.hbm [shape: f32[32,32], index: 7, kind: input, shape index: {}]
  %s8 = inlined_call_operand.hbm [shape: f32[32,1], index: 8, kind: input, shape index: {}]
  %s9 = inlined_call_operand.hbm [shape: f32[2,32,256], index: 9, kind: output, shape index: {}]
  %s10 = sld [smem:[#allocation0]]
  $region105: #{fwd.1} parent=0
    _
  %s12 = ssub.s32 1, %s10
  %s13 = scalar_select 0, %s12, %s10
  $region1: #{fwd.1} parent=0
    #allocation3 [shape = 'u8[12288]{0}', space=vmem, size = 0x3000, scoped, tag = 'input window, operand 0']
    #allocation4 [shape = 's32[2]{0}', space=sflag, size = 0x8, scoped, tag = 'scoped memory for fwd.1']
    #allocation5 [shape = 's32[2]{0}', space=sflag, size = 0x8, scoped, tag = 'scoped memory for fwd.1']
    #allocation6 [shape = 'u8[8192]{0}', space=vmem, size = 0x2000, scoped, tag = 'input window, operand 1']
    #allocation7 [shape = 's32[2]{0}', space=sflag, size = 0x8, scoped, tag = 'scoped memory for fwd.1']
    #allocation8 [shape = 'u8[131072]{0}', space=vmem, size = 0x20000, scoped, tag = 'input window, operand 2, single buffered']
    #allocation9 [shape = 'u8[65536]{0}', space=vmem, size = 0x10000, scoped, tag = 'input window, operand 3, single buffered']
    #allocation10 [shape = 's32[1]{0}', space=sflag, size = 0x4, scoped, tag = 'scoped memory for fwd.1']
    #allocation11 [shape = 'u8[16384]{0}', space=vmem, size = 0x4000, scoped, tag = 'input window, operand 4, single buffered']
    #allocation12 [shape = 'u8[16384]{0}', space=vmem, size = 0x4000, scoped, tag = 'input window, operand 5, single buffered']
    #allocation13 [shape = 's32[1]{0}', space=sflag, size = 0x4, scoped, tag = 'scoped memory for fwd.1']
    #allocation14 [shape = 'u8[8192]{0}', space=vmem, size = 0x2000, scoped, tag = 'input window, operand 6, single buffered']
    #allocation15 [shape = 'u8[16384]{0}', space=vmem, size = 0x4000, scoped, tag = 'input window, operand 7, single buffered']
    #allocation16 [shape = 's32[1]{0}', space=sflag, size = 0x4, scoped, tag = 'scoped memory for fwd.1']
    #allocation17 [shape = 'u8[16384]{0}', space=vmem, size = 0x4000, scoped, tag = 'input window, operand 8, single buffered']
    #allocation18 [shape = 'u8[32768]{0}', space=vmem, size = 0x8000, scoped, tag = 'output window, operand 0']
    %14 = vsyncpa [#allocation4], 0
    %s15 = scalar_lea.sflag [#allocation4], 1
    %16 = vsyncpa %s15, 0
    %17 = vsyncpa [#allocation7], 0
    %s18 = scalar_lea.sflag [#allocation7], 1
    %19 = vsyncpa %s18, 0
    %20 = vsyncpa [#allocation10], 0
    %21 = vsyncpa [#allocation13], 0
    %22 = vsyncpa [#allocation16], 0
    %23 = vsyncpa [#allocation5], 0
    %s24 = scalar_lea.sflag [#allocation5], 1
    %25 = vsyncpa %s24, 0
    loop: start=0, step=1, limit=6
    $region2: #{fwd.1} parent=1 // loop_pre_header
      _
    $region3: #{fwd.1} parent=1 // loop_header
      %s27 = sphi 0, %s31
      %p28 = scmp.ge.s32.totalorder %s27, 6
      %s34 = sphi 0, %s46
      %s35 = sphi 0, %s42
      %s36 = sphi 0, %s34
      %s37 = sphi 0, %s35
      %s38 = sphi 0, %s36
      %s39 = sphi 0, %s37
      %s49 = sphi 0, %s51
      %s52 = sphi 0, %s49
      %s53 = sphi 0, %s52
      %s69 = sphi 0, %s53
      %s75 = sphi 0, %s77
      %s78 = sphi 0, %s75
      %s79 = sphi 0, %s78
      %s95 = sphi 0, %s79
      %s99 = sphi 0, %s99
      %s101 = sphi 0, %s99
      %s102 = sphi 0, %s101
      %s116 = sphi 0, %s102
      %s120 = sphi 0, %s120
      %s122 = sphi 0, %s120
      %s123 = sphi 0, %s122
      %s137 = sphi 0, %s123
      %s141 = sphi 0, %s141
      %s143 = sphi 0, %s141
      %s144 = sphi 0, %s143
      %s158 = sphi 0, %s144
      %s162 = sphi 0, %s162
      %s164 = sphi 0, %s162
      %s165 = sphi 0, %s164
      %s179 = sphi 0, %s165
      %s183 = sphi 0, %s183
      %s185 = sphi 0, %s183
      %s186 = sphi 0, %s185
      %s200 = sphi 0, %s186
      %s204 = sphi 0, %s204
      %s206 = sphi 0, %s204
      %s207 = sphi 0, %s206
      %s221 = sphi 0, %s207
      %s225 = sphi 0, %s225
      %s227 = sphi 0, %s225
      %s228 = sphi 0, %s227
      %s242 = sphi 0, %s228
      %s250 = sphi 0, %s252
      %s253 = sphi 0, %s250
      %s254 = sphi 0, %s253
      %s270 = sphi 0, %s254
    $region4: #{fwd.1} parent=1 // loop_header_branch
      %30 = sbr.rel (%p28) target = $region8
    $region5: #{fwd.1} parent=1 // loop_body
      %s32 = ssub.s32 %s27, 1
      %s33 = ssub.s32 %s27, 2
      %s40 = sadd.s32 1, %s35
      %p41 = scmp.ge.s32.totalorder %s40, 2
      %s42 = scalar_select %p41, 0, %s40
      %s43 = sadd.s32 1, %s34
      %s44 = scalar_select %p41, %s43, %s34
      %p45 = scmp.ge.s32.totalorder %s44, 2
      %s46 = scalar_select %p45, 0, %s44
      %s47 = ssub.s32 %s34, %s46
      %p48 = scmp.eq.s32.totalorder %s47, 0
      %s50 = sadd.s32 %s49, 1
      %s51 = scalar_select %p48, %s49, %s50
      %p54 = pneg %p48
      %p55 = scmp.eq.s32.totalorder %s27, 3
      %p56 = por %p54, %p55
      %p57 = scmp.ne.s32.totalorder %s49, %s52
      %p58 = scmp.eq.s32.totalorder %s27, 0
      %p59 = por %p57, %p58
      %p60 = scmp.ne.s32.totalorder %s49, %s52
      %p61 = scmp.eq.s32.totalorder %s32, 3
      %p62 = por %p60, %p61
      %p63 = scmp.ne.s32.totalorder %s52, %s53
      %p64 = scmp.eq.s32.totalorder %s32, 0
      %p65 = por %p63, %p64
      %p66 = scmp.ne.s32.totalorder %s52, %s53
      %p67 = scmp.eq.s32.totalorder %s33, 3
      %p68 = por %p66, %p67
      %p70 = scmp.ne.s32.totalorder %s53, %s69
      %p71 = scmp.eq.s32.totalorder %s33, 0
      %p72 = por %p70, %p71
      %s73 = ssub.s32 %s35, %s42
      %p74 = scmp.eq.s32.totalorder %s73, 0
      %s76 = sadd.s32 %s75, 1
      %s77 = scalar_select %p74, %s75, %s76
      %p80 = pneg %p74
      %p81 = scmp.eq.s32.totalorder %s27, 3
      %p82 = por %p80, %p81
      %p83 = scmp.ne.s32.totalorder %s75, %s78
      %p84 = scmp.eq.s32.totalorder %s27, 0
      %p85 = por %p83, %p84
      %p86 = scmp.ne.s32.totalorder %s75, %s78
      %p87 = scmp.eq.s32.totalorder %s32, 3
      %p88 = por %p86, %p87
      %p89 = scmp.ne.s32.totalorder %s78, %s79
      %p90 = scmp.eq.s32.totalorder %s32, 0
      %p91 = por %p89, %p90
      %p92 = scmp.ne.s32.totalorder %s78, %s79
      %p93 = scmp.eq.s32.totalorder %s33, 3
      %p94 = por %p92, %p93
      %p96 = scmp.ne.s32.totalorder %s79, %s95
      %p97 = scmp.eq.s32.totalorder %s33, 0
      %p98 = por %p96, %p97
      %s100 = sadd.s32 %s99, 1
      %p103 = scmp.eq.s32.totalorder %s27, 3
      %p104 = scmp.ne.s32.totalorder %s99, %s101
      %p105 = scmp.eq.s32.totalorder %s27, 0
      %p106 = por %p104, %p105
      %p107 = scmp.ne.s32.totalorder %s99, %s101
      %p108 = scmp.eq.s32.totalorder %s32, 3
      %p109 = por %p107, %p108
      %p110 = scmp.ne.s32.totalorder %s101, %s102
      %p111 = scmp.eq.s32.totalorder %s32, 0
      %p112 = por %p110, %p111
      %p113 = scmp.ne.s32.totalorder %s101, %s102
      %p114 = scmp.eq.s32.totalorder %s33, 3
      %p115 = por %p113, %p114
      %p117 = scmp.ne.s32.totalorder %s102, %s116
      %p118 = scmp.eq.s32.totalorder %s33, 0
      %p119 = por %p117, %p118
      %s121 = sadd.s32 %s120, 1
      %p124 = scmp.eq.s32.totalorder %s27, 3
      %p125 = scmp.ne.s32.totalorder %s120, %s122
      %p126 = scmp.eq.s32.totalorder %s27, 0
      %p127 = por %p125, %p126
      %p128 = scmp.ne.s32.totalorder %s120, %s122
      %p129 = scmp.eq.s32.totalorder %s32, 3
      %p130 = por %p128, %p129
      %p131 = scmp.ne.s32.totalorder %s122, %s123
      %p132 = scmp.eq.s32.totalorder %s32, 0
      %p133 = por %p131, %p132
      %p134 = scmp.ne.s32.totalorder %s122, %s123
      %p135 = scmp.eq.s32.totalorder %s33, 3
      %p136 = por %p134, %p135
      %p138 = scmp.ne.s32.totalorder %s123, %s137
      %p139 = scmp.eq.s32.totalorder %s33, 0
      %p140 = por %p138, %p139
      %s142 = sadd.s32 %s141, 1
      %p145 = scmp.eq.s32.totalorder %s27, 3
      %p146 = scmp.ne.s32.totalorder %s141, %s143
      %p147 = scmp.eq.s32.totalorder %s27, 0
      %p148 = por %p146, %p147
      %p149 = scmp.ne.s32.totalorder %s141, %s143
      %p150 = scmp.eq.s32.totalorder %s32, 3
      %p151 = por %p149, %p150
      %p152 = scmp.ne.s32.totalorder %s143, %s144
      %p153 = scmp.eq.s32.totalorder %s32, 0
      %p154 = por %p152, %p153
      %p155 = scmp.ne.s32.totalorder %s143, %s144
      %p156 = scmp.eq.s32.totalorder %s33, 3
      %p157 = por %p155, %p156
      %p159 = scmp.ne.s32.totalorder %s144, %s158
      %p160 = scmp.eq.s32.totalorder %s33, 0
      %p161 = por %p159, %p160
      %s163 = sadd.s32 %s162, 1
      %p166 = scmp.eq.s32.totalorder %s27, 3
      %p167 = scmp.ne.s32.totalorder %s162, %s164
      %p168 = scmp.eq.s32.totalorder %s27, 0
      %p169 = por %p167, %p168
      %p170 = scmp.ne.s32.totalorder %s162, %s164
      %p171 = scmp.eq.s32.totalorder %s32, 3
      %p172 = por %p170, %p171
      %p173 = scmp.ne.s32.totalorder %s164, %s165
      %p174 = scmp.eq.s32.totalorder %s32, 0
      %p175 = por %p173, %p174
      %p176 = scmp.ne.s32.totalorder %s164, %s165
      %p177 = scmp.eq.s32.totalorder %s33, 3
      %p178 = por %p176, %p177
      %p180 = scmp.ne.s32.totalorder %s165, %s179
      %p181 = scmp.eq.s32.totalorder %s33, 0
      %p182 = por %p180, %p181
      %s184 = sadd.s32 %s183, 1
      %p187 = scmp.eq.s32.totalorder %s27, 3
      %p188 = scmp.ne.s32.totalorder %s183, %s185
      %p189 = scmp.eq.s32.totalorder %s27, 0
      %p190 = por %p188, %p189
      %p191 = scmp.ne.s32.totalorder %s183, %s185
      %p192 = scmp.eq.s32.totalorder %s32, 3
      %p193 = por %p191, %p192
      %p194 = scmp.ne.s32.totalorder %s185, %s186
      %p195 = scmp.eq.s32.totalorder %s32, 0
      %p196 = por %p194, %p195
      %p197 = scmp.ne.s32.totalorder %s185, %s186
      %p198 = scmp.eq.s32.totalorder %s33, 3
      %p199 = por %p197, %p198
      %p201 = scmp.ne.s32.totalorder %s186, %s200
      %p202 = scmp.eq.s32.totalorder %s33, 0
      %p203 = por %p201, %p202
      %s205 = sadd.s32 %s204, 1
      %p208 = scmp.eq.s32.totalorder %s27, 3
      %p209 = scmp.ne.s32.totalorder %s204, %s206
      %p210 = scmp.eq.s32.totalorder %s27, 0
      %p211 = por %p209, %p210
      %p212 = scmp.ne.s32.totalorder %s204, %s206
      %p213 = scmp.eq.s32.totalorder %s32, 3
      %p214 = por %p212, %p213
      %p215 = scmp.ne.s32.totalorder %s206, %s207
      %p216 = scmp.eq.s32.totalorder %s32, 0
      %p217 = por %p215, %p216
      %p218 = scmp.ne.s32.totalorder %s206, %s207
      %p219 = scmp.eq.s32.totalorder %s33, 3
      %p220 = por %p218, %p219
      %p222 = scmp.ne.s32.totalorder %s207, %s221
      %p223 = scmp.eq.s32.totalorder %s33, 0
      %p224 = por %p222, %p223
      %s226 = sadd.s32 %s225, 1
      %p229 = scmp.eq.s32.totalorder %s27, 3
      %p230 = scmp.ne.s32.totalorder %s225, %s227
      %p231 = scmp.eq.s32.totalorder %s27, 0
      %p232 = por %p230, %p231
      %p233 = scmp.ne.s32.totalorder %s225, %s227
      %p234 = scmp.eq.s32.totalorder %s32, 3
      %p235 = por %p233, %p234
      %p236 = scmp.ne.s32.totalorder %s227, %s228
      %p237 = scmp.eq.s32.totalorder %s32, 0
      %p238 = por %p236, %p237
      %p239 = scmp.ne.s32.totalorder %s227, %s228
      %p240 = scmp.eq.s32.totalorder %s33, 3
      %p241 = por %p239, %p240
      %p243 = scmp.ne.s32.totalorder %s228, %s242
      %p244 = scmp.eq.s32.totalorder %s33, 0
      %p245 = por %p243, %p244
      %s246 = ssub.s32 %s34, %s46
      %s247 = ssub.s32 %s35, %s42
      %s248 = sor.u32 %s246, %s247
      %p249 = scmp.eq.s32.totalorder %s248, 0
      %s251 = sadd.s32 %s250, 1
      %s252 = scalar_select %p249, %s250, %s251
      %p255 = pneg %p249
      %p256 = scmp.eq.s32.totalorder %s27, 3
      %p257 = por %p255, %p256
      %p258 = scmp.ne.s32.totalorder %s250, %s253
      %p259 = scmp.eq.s32.totalorder %s27, 0
      %p260 = por %p258, %p259
      %p261 = scmp.ne.s32.totalorder %s250, %s253
      %p262 = scmp.eq.s32.totalorder %s32, 3
      %p263 = por %p261, %p262
      %p264 = scmp.ne.s32.totalorder %s253, %s254
      %p265 = scmp.eq.s32.totalorder %s32, 0
      %p266 = por %p264, %p265
      %p267 = scmp.ne.s32.totalorder %s253, %s254
      %p268 = scmp.eq.s32.totalorder %s33, 3
      %p269 = por %p267, %p268
      %p271 = scmp.ne.s32.totalorder %s254, %s270
      %p272 = scmp.eq.s32.totalorder %s33, 0
      %p273 = por %p271, %p272
      %p274 = scmp.le.s32.totalorder 1, %s27
      %p275 = scmp.lt.s32.totalorder %s27, 5
      %p276 = pnand %p274, %p275
      %p277 = pneg %p276
      // Predicated region
      $region9: #{fwd.1} parent=5 // pred_check
        _
      $region10: #{fwd.1} parent=5 // pred_check_branch
        %279 = sbr.rel (%p276) target = $region12
      $region11: #{fwd.1} parent=5 // pred_region
        %s280 = ssub.s32 %s27, 1
        // Predicated region
        $region13: #{fwd.1} parent=11 // pred_check
          %p281 = pneg %p112
        $region14: #{fwd.1} parent=11 // pred_check_branch
          %283 = sbr.rel (%p281) target = $region16
        $region15: #{fwd.1} parent=11 // pred_region
          %s285 = ssub.s32 4096, 4096
          %286 = vsyncadd [#allocation7], %s285
          %s287 = sshll.u32 [#allocation8], 4
          %s288 = int_to_ptr.vmem [resolvable:$true] %s287
          %293 = dma.hbm_to_vmem [thread:$0]  %s2, 4096, %s288, [#allocation7], 256, 256, 16
        $region16: #{fwd.1} parent=11 // pred_fallthru
          _
        // Predicated region
        $region17: #{fwd.1} parent=11 // pred_check
          %p294 = pneg %p133
        $region18: #{fwd.1} parent=11 // pred_check_branch
          %296 = sbr.rel (%p294) target = $region20
        $region19: #{fwd.1} parent=11 // pred_region
          %s298 = ssub.s32 2048, 2048
          %299 = vsyncadd [#allocation10], %s298
          %s300 = sshll.u32 [#allocation9], 4
          %s301 = int_to_ptr.vmem [resolvable:$true] %s300
          %306 = dma.hbm_to_vmem [thread:$0]  %s3, 2048, %s301, [#allocation10], 128, 128, 8
        $region20: #{fwd.1} parent=11 // pred_fallthru
          _
        // Predicated region
        $region21: #{fwd.1} parent=11 // pred_check
          %p307 = pneg %p154
        $region22: #{fwd.1} parent=11 // pred_check_branch
          %309 = sbr.rel (%p307) target = $region24
        $region23: #{fwd.1} parent=11 // pred_region
          %s311 = ssub.s32 512, 512
          %312 = vsyncadd [#allocation10], %s311
          %s313 = sshll.u32 [#allocation11], 4
          %s314 = int_to_ptr.vmem [resolvable:$true] %s313
          %319 = dma.hbm_to_vmem [thread:$0]  %s4, 512, %s314, [#allocation10], 128, 128, 8
        $region24: #{fwd.1} parent=11 // pred_fallthru
          _
        // Predicated region
        $region25: #{fwd.1} parent=11 // pred_check
          %p320 = pneg %p175
        $region26: #{fwd.1} parent=11 // pred_check_branch
          %322 = sbr.rel (%p320) target = $region28
        $region27: #{fwd.1} parent=11 // pred_region
          %s324 = ssub.s32 512, 512
          %325 = vsyncadd [#allocation13], %s324
          %s326 = sshll.u32 [#allocation12], 4
          %s327 = int_to_ptr.vmem [resolvable:$true] %s326
          %332 = dma.hbm_to_vmem [thread:$0]  %s5, 512, %s327, [#allocation13], 128, 128, 8
        $region28: #{fwd.1} parent=11 // pred_fallthru
          _
        // Predicated region
        $region29: #{fwd.1} parent=11 // pred_check
          %p333 = pneg %p196
        $region30: #{fwd.1} parent=11 // pred_check_branch
          %335 = sbr.rel (%p333) target = $region32
        $region31: #{fwd.1} parent=11 // pred_region
          %s337 = ssub.s32 256, 256
          %338 = vsyncadd [#allocation13], %s337
          %s339 = sshll.u32 [#allocation14], 4
          %s340 = int_to_ptr.vmem [resolvable:$true] %s339
          %345 = dma.hbm_to_vmem [thread:$0]  %s6, 256, %s340, [#allocation13], 64, 64, 4
        $region32: #{fwd.1} parent=11 // pred_fallthru
          _
        // Predicated region
        $region33: #{fwd.1} parent=11 // pred_check
          %p346 = pneg %p217
        $region34: #{fwd.1} parent=11 // pred_check_branch
          %348 = sbr.rel (%p346) target = $region36
        $region35: #{fwd.1} parent=11 // pred_region
          %s350 = ssub.s32 512, 512
          %351 = vsyncadd [#allocation16], %s350
          %s352 = sshll.u32 [#allocation15], 4
          %s353 = int_to_ptr.vmem [resolvable:$true] %s352
          %358 = dma.hbm_to_vmem [thread:$0]  %s7, 512, %s353, [#allocation16], 128, 128, 8
        $region36: #{fwd.1} parent=11 // pred_fallthru
          _
        // Predicated region
        $region37: #{fwd.1} parent=11 // pred_check
          %p359 = pneg %p238
        $region38: #{fwd.1} parent=11 // pred_check_branch
          %361 = sbr.rel (%p359) target = $region40
        $region39: #{fwd.1} parent=11 // pred_region
          %s363 = ssub.s32 512, 512
          %364 = vsyncadd [#allocation16], %s363
          %s365 = sshll.u32 [#allocation17], 4
          %s366 = int_to_ptr.vmem [resolvable:$true] %s365
          %371 = dma.hbm_to_vmem [thread:$0]  %s8, 512, %s366, [#allocation16], 128, 128, 8
        $region40: #{fwd.1} parent=11 // pred_fallthru
          _
      $region12: #{fwd.1} parent=5 // pred_fallthru
        _
      %p372 = scmp.lt.s32.totalorder %s27, 4
      // Predicated region
      $region41: #{fwd.1} parent=5 // pred_check
        %p373 = pneg %p372
      $region42: #{fwd.1} parent=5 // pred_check_branch
        %375 = sbr.rel (%p373) target = $region44
      $region43: #{fwd.1} parent=5 // pred_region
        // Predicated region
        $region45: #{fwd.1} parent=43 // pred_check
          %p376 = pneg %p59
        $region46: #{fwd.1} parent=43 // pred_check_branch
          %378 = sbr.rel (%p376) target = $region48
        $region47: #{fwd.1} parent=43 // pred_region
          %s379 = sand.u32 %s49, 1
          %s380 = scalar_lea.sflag [#allocation4], %s379
          %s381 = sand.u32 %s49, 1
          %s382 = smul.addr %s381, 12
          %s383 = scalar_lea.vmem [#allocation3], %s382
          %s385 = ssub.s32 192, 192
          %386 = vsyncadd %s380, %s385
          %s387 = smul.addr %s34, 3
          %s388 = smul.addr %s387, 64
          %s389 = scalar_lea.hbm %s0, %s388
          %s391 = sshll.u32 %s383, 4
          %s392 = int_to_ptr.vmem [resolvable:$true] %s391
          %394 = dma.hbm_to_vmem [thread:$0]  %s389, 192, %s392, %s380
        $region48: #{fwd.1} parent=43 // pred_fallthru
          _
        // Predicated region
        $region49: #{fwd.1} parent=43 // pred_check
          %p395 = pneg %p85
        $region50: #{fwd.1} parent=43 // pred_check_branch
          %397 = sbr.rel (%p395) target = $region52
        $region51: #{fwd.1} parent=43 // pred_region
          %s398 = sand.u32 %s27, 1
          %s399 = scalar_lea.sflag [#allocation7], %s398
          %s400 = sand.u32 %s75, 1
          %s401 = smul.addr %s400, 8
          %s402 = scalar_lea.vmem [#allocation6], %s401
          %s404 = ssub.s32 128, 128
          %405 = vsyncadd %s399, %s404
          %s406 = smul.addr %s35, 128
          %s407 = scalar_lea.hbm %s1, %s406
          %s409 = sshll.u32 %s402, 4
          %s410 = int_to_ptr.vmem [resolvable:$true] %s409
          %412 = dma.hbm_to_vmem [thread:$0]  %s407, 128, %s410, %s399
        $region52: #{fwd.1} parent=43 // pred_fallthru
          _
      $region44: #{fwd.1} parent=5 // pred_fallthru
        _
      %p413 = scmp.le.s32.totalorder 1, %s27
      %p414 = scmp.lt.s32.totalorder %s27, 5
      %p415 = pnand %p413, %p414
      %p416 = pneg %p415
      // Predicated region
      $region53: #{fwd.1} parent=5 // pred_check
        _
      $region54: #{fwd.1} parent=5 // pred_check_branch
        %418 = sbr.rel (%p415) target = $region56
      $region55: #{fwd.1} parent=5 // pred_region
        %s419 = ssub.s32 %s27, 1
        %s420 = sand.u32 %s52, 1
        %s421 = scalar_lea.sflag [#allocation4], %s420
        %s422 = sand.u32 %s52, 1
        %s423 = smul.addr %s422, 12
        %s424 = scalar_lea.vmem [#allocation3], %s423
        // Predicated region
        $region57: #{fwd.1} parent=55 // pred_check
          %p425 = pneg %p65
        $region58: #{fwd.1} parent=55 // pred_check_branch
          %427 = sbr.rel (%p425) target = $region60
        $region59: #{fwd.1} parent=55 // pred_region
          %428 = dma.done %s421, 192
        $region60: #{fwd.1} parent=55 // pred_fallthru
          _
        %s429 = sand.u32 %s32, 1
        %s430 = scalar_lea.sflag [#allocation7], %s429
        %s431 = sand.u32 %s78, 1
        %s432 = smul.addr %s431, 8
        %s433 = scalar_lea.vmem [#allocation6], %s432
        // Predicated region
        $region61: #{fwd.1} parent=55 // pred_check
          %p434 = pneg %p91
        $region62: #{fwd.1} parent=55 // pred_check_branch
          %436 = sbr.rel (%p434) target = $region64
        $region63: #{fwd.1} parent=55 // pred_region
          %437 = dma.done %s430, 128
        $region64: #{fwd.1} parent=55 // pred_fallthru
          _
        // Predicated region
        $region65: #{fwd.1} parent=55 // pred_check
          %p438 = pneg %p112
        $region66: #{fwd.1} parent=55 // pred_check_branch
          %440 = sbr.rel (%p438) target = $region68
        $region67: #{fwd.1} parent=55 // pred_region
          %441 = dma.done [#allocation7], 4096
        $region68: #{fwd.1} parent=55 // pred_fallthru
          _
        // Predicated region
        $region69: #{fwd.1} parent=55 // pred_check
          %p442 = pneg %p133
        $region70: #{fwd.1} parent=55 // pred_check_branch
          %444 = sbr.rel (%p442) target = $region72
        $region71: #{fwd.1} parent=55 // pred_region
          %445 = dma.done [#allocation10], 2048
        $region72: #{fwd.1} parent=55 // pred_fallthru
          _
        // Predicated region
        $region73: #{fwd.1} parent=55 // pred_check
          %p446 = pneg %p154
        $region74: #{fwd.1} parent=55 // pred_check_branch
          %448 = sbr.rel (%p446) target = $region76
        $region75: #{fwd.1} parent=55 // pred_region
          %449 = dma.done [#allocation10], 512
        $region76: #{fwd.1} parent=55 // pred_fallthru
          _
        // Predicated region
        $region77: #{fwd.1} parent=55 // pred_check
          %p450 = pneg %p175
        $region78: #{fwd.1} parent=55 // pred_check_branch
          %452 = sbr.rel (%p450) target = $region80
        $region79: #{fwd.1} parent=55 // pred_region
          %453 = dma.done [#allocation13], 512
        $region80: #{fwd.1} parent=55 // pred_fallthru
          _
        // Predicated region
        $region81: #{fwd.1} parent=55 // pred_check
          %p454 = pneg %p196
        $region82: #{fwd.1} parent=55 // pred_check_branch
          %456 = sbr.rel (%p454) target = $region84
        $region83: #{fwd.1} parent=55 // pred_region
          %457 = dma.done [#allocation13], 256
        $region84: #{fwd.1} parent=55 // pred_fallthru
          _
        // Predicated region
        $region85: #{fwd.1} parent=55 // pred_check
          %p458 = pneg %p217
        $region86: #{fwd.1} parent=55 // pred_check_branch
          %460 = sbr.rel (%p458) target = $region88
        $region87: #{fwd.1} parent=55 // pred_region
          %461 = dma.done [#allocation16], 512
        $region88: #{fwd.1} parent=55 // pred_fallthru
          _
        // Predicated region
        $region89: #{fwd.1} parent=55 // pred_check
          %p462 = pneg %p238
        $region90: #{fwd.1} parent=55 // pred_check_branch
          %464 = sbr.rel (%p462) target = $region92
        $region91: #{fwd.1} parent=55 // pred_region
          %465 = dma.done [#allocation16], 512
        $region92: #{fwd.1} parent=55 // pred_fallthru
          _
        %s466 = sand.u32 %s52, 1
        %s467 = scalar_lea.sflag [#allocation4], %s466
        %s468 = sand.u32 %s52, 1
        %s469 = smul.addr %s468, 12
        %s470 = scalar_lea.vmem [#allocation3], %s469
        %p471 = pneg %p65
        %p472 = pneg %p62
        %s473 = sand.u32 %s32, 1
        %s474 = scalar_lea.sflag [#allocation7], %s473
        %s475 = sand.u32 %s78, 1
        %s476 = smul.addr %s475, 8
        %s477 = scalar_lea.vmem [#allocation6], %s476
        %p478 = pneg %p91
        %p479 = pneg %p88
        %p480 = pneg %p112
        %p481 = pneg %p109
        %p482 = pneg %p133
        %p483 = pneg %p130
        %p484 = pneg %p154
        %p485 = pneg %p151
        %p486 = pneg %p175
        %p487 = pneg %p172
        %p488 = pneg %p196
        %p489 = pneg %p193
        %p490 = pneg %p217
        %p491 = pneg %p214
        %p492 = pneg %p238
        %p493 = pneg %p235
        %p494 = pneg %p266
        %p495 = pneg %p263
        %s496 = sand.u32 %s253, 1
        %s497 = scalar_lea.sflag [#allocation5], %s496
        %s498 = sand.u32 %s253, 1
        %s499 = smul.addr %s498, 32
        %s500 = scalar_lea.vmem [#allocation18], %s499
        %s502 = smul.u32 %s37, 128
        %s503 = sshra.s32 %s502, 7
        %s504 = sand.u32 %s502, 127
        %s505 = smul.addr %s503, 4
        %s506 = scalar_lea.vmem %s424, %s505 [#allocation3]
        %v507 = vld [vmem:[%s506] sm:$0xff]
        %v508 = vld [vmem:[%s424] sm:$0xff]
        %v509 = vld [vmem:[%s424 + $0x8] sm:$0xf]
        %v512 = vcombine.high %v508, %v508
        %513 = vrot.lane.b32.xlu0 %v508, 77
        %v514 = vpop.permute.xlu0 %513
        %515 = vrot.lane.b32.xlu0 %v512, 77
        %v516 = vpop.permute.xlu0 %515
        %517 = vrot.lane.b32.xlu0 %v509, 77
        %v518 = vpop.permute.xlu0 %517
        %vm519 = vcmask 629760
        %v520 = vsel %vm519, %v514, %v516
        %v521 = vsel %vm519, %v516, %v518
        %vm524 = vcmask 1043456
        %v525 = vsel %vm524, %v520, 0.0
        %v526 = vsel %vm524, %v521, 0.0
        %v527 = vadd.f32 %v525, %v526
        %528 = vadd.xlane.f32.xlu0 %v527
        %v529 = vpop.xlane.xlu0 %528
        %v530 = vrcp.pop 256.0
        %v531 = vmul.f32 %v529, %v530
        %v533 = vcombine.high %v507, %v507
        %v535 = vsel %vm524, %v507, 0.0
        %v536 = vsel %vm524, %v533, 0.0
        %v537 = vpack.c.bf16 0.0, %v535
        %v538 = vpack.c.bf16 0.0, %v536
        %541 = vrot.lane.b32.xlu0 %v537, 77
        %v542 = vpop.permute.xlu0 %541
        %543 = vrot.lane.b32.xlu0 %v538, 77
        %v544 = vpop.permute.xlu0 %543
        %vm545 = vcmask 629760
        %v546 = vsel %vm545, %v542, %v544
        %548 = vst [vmem:[#allocation2] sm:$0xff] %v546
        %v549 = vld [vmem:[%s433 + $0x2] sm:$0x1]
        %vm550 = vcmp.gt.f32.partialorder %v549, 0.0
        %v551 = vsel %vm550, 1, 0
        %v552 = vlaneseq
        %v553 = vshrl.u32 %v552, 7
        %v554 = vsub.s32 0, %v553
        %v555 = vrot.slane %v551, %v554
        %vm556 = vcmp.eq.s32.totalorder %v555, 1
        %557 = vrot.lane.b32.xlu0 %v507, 94
        %v558 = vpop.permute.xlu0 %557
        %559 = vrot.lane.b32.xlu0 %v533, 94
        %v560 = vpop.permute.xlu0 %559
        %vm561 = vcmask 769024
        %v562 = vsel %vm561, %v558, %v560
        %v564 = vsel %vm556, %v562, 0.0
        %v565 = vsel %vm524, %v564, 0.0
        %v566 = vpack.c.bf16 0.0, %v565
        %567 = vst [vmem:[#allocation2 + $0x8] sm:$0xff] %v566
        %568 = vrot.lane.b32.xlu0 %v537, 93
        %v569 = vpop.permute.xlu0 %568
        %570 = vrot.lane.b32.xlu0 %v538, 93
        %v571 = vpop.permute.xlu0 %570
        %vm572 = vcmask 760832
        %v573 = vsel %vm572, %v569, %v571
        %575 = vst [vmem:[#allocation2 + $0x10] sm:$0xff] %v573
        %v576 = vld [vmem:[%s433 + $0x3] sm:$0x1]
        %vm577 = vcmp.gt.f32.partialorder %v576, 0.0
        %v578 = vsel %vm577, 1, 0
        %v579 = vlaneseq
        %v580 = vshrl.u32 %v579, 7
        %v581 = vsub.s32 0, %v580
        %v582 = vrot.slane %v578, %v581
        %vm583 = vcmp.eq.s32.totalorder %v582, 1
        %584 = vrot.lane.b32.xlu0 %v507, 92
        %v585 = vpop.permute.xlu0 %584
        %586 = vrot.lane.b32.xlu0 %v533, 92
        %v587 = vpop.permute.xlu0 %586
        %vm588 = vcmask 752640
        %v589 = vsel %vm588, %v585, %v587
        %v591 = vsel %vm583, %v589, 0.0
        %v592 = vsel %vm524, %v591, 0.0
        %v593 = vpack.c.bf16 0.0, %v592
        %594 = vst [vmem:[#allocation2 + $0x18] sm:$0xff] %v593
        %v595 = vld [vmem:[%s433 + $0x2] sm:$0x1]
        %vm596 = vcmp.gt.f32.partialorder %v595, 0.0
        %v597 = vsel %vm596, 1, 0
        %v598 = vlaneseq
        %v599 = vshrl.u32 %v598, 7
        %v600 = vsub.s32 0, %v599
        %v601 = vrot.slane %v597, %v600
        %vm602 = vcmp.eq.s32.totalorder %v601, 1
        %603 = vrot.lane.b32.xlu0 %v507, 78
        %v604 = vpop.permute.xlu0 %603
        %605 = vrot.lane.b32.xlu0 %v533, 78
        %v606 = vpop.permute.xlu0 %605
        %vm607 = vcmask 637952
        %v608 = vsel %vm607, %v604, %v606
        %v610 = vsel %vm602, %v608, 0.0
        %v611 = vsel %vm524, %v610, 0.0
        %v612 = vpack.c.bf16 0.0, %v611
        %613 = vst [vmem:[#allocation2 + $0x20] sm:$0xff] %v612
        %v614 = vld [vmem:[%s433 + $0x3] sm:$0x1]
        %vm615 = vcmp.gt.f32.partialorder %v614, 0.0
        %v616 = vsel %vm615, 1, 0
        %v617 = vlaneseq
        %v618 = vshrl.u32 %v617, 7
        %v619 = vsub.s32 0, %v618
        %v620 = vrot.slane %v616, %v619
        %vm621 = vcmp.eq.s32.totalorder %v620, 1
        %622 = vrot.lane.b32.xlu0 %v507, 76
        %v623 = vpop.permute.xlu0 %622
        %624 = vrot.lane.b32.xlu0 %v533, 76
        %v625 = vpop.permute.xlu0 %624
        %vm626 = vcmask 621568
        %v627 = vsel %vm626, %v623, %v625
        %v629 = vsel %vm621, %v627, 0.0
        %v630 = vsel %vm524, %v629, 0.0
        %v631 = vpack.c.bf16 0.0, %v630
        %632 = vst [vmem:[#allocation2 + $0x28] sm:$0xff] %v631
        %v633 = vld [vmem:[%s433 + $0x2] sm:$0x1]
        %vm634 = vcmp.gt.f32.partialorder %v633, 0.0
        %v635 = vsel %vm634, 1, 0
        %v636 = vlaneseq
        %v637 = vshrl.u32 %v636, 7
        %v638 = vsub.s32 0, %v637
        %v639 = vrot.slane %v635, %v638
        %vm640 = vcmp.eq.s32.totalorder %v639, 1
        %641 = vrot.lane.b32.xlu0 %v507, 62
        %v642 = vpop.permute.xlu0 %641
        %643 = vrot.lane.b32.xlu0 %v533, 62
        %v644 = vpop.permute.xlu0 %643
        %vm645 = vcmask 506880
        %v646 = vsel %vm645, %v642, %v644
        %v648 = vsel %vm640, %v646, 0.0
        %v649 = vsel %vm524, %v648, 0.0
        %v650 = vpack.c.bf16 0.0, %v649
        %651 = vst [vmem:[#allocation2 + $0x30] sm:$0xff] %v650
        %652 = vrot.lane.b32.xlu0 %v537, 61
        %v653 = vpop.permute.xlu0 %652
        %654 = vrot.lane.b32.xlu0 %v538, 61
        %v655 = vpop.permute.xlu0 %654
        %vm656 = vcmask 498688
        %v657 = vsel %vm656, %v653, %v655
        %659 = vst [vmem:[#allocation2 + $0x38] sm:$0xff] %v657
        %v660 = vld [vmem:[%s433 + $0x3] sm:$0x1]
        %vm661 = vcmp.gt.f32.partialorder %v660, 0.0
        %v662 = vsel %vm661, 1, 0
        %v663 = vlaneseq
        %v664 = vshrl.u32 %v663, 7
        %v665 = vsub.s32 0, %v664
        %v666 = vrot.slane %v662, %v665
        %vm667 = vcmp.eq.s32.totalorder %v666, 1
        %668 = vrot.lane.b32.xlu0 %v507, 60
        %v669 = vpop.permute.xlu0 %668
        %670 = vrot.lane.b32.xlu0 %v533, 60
        %v671 = vpop.permute.xlu0 %670
        %vm672 = vcmask 490496
        %v673 = vsel %vm672, %v669, %v671
        %v675 = vsel %vm667, %v673, 0.0
        %v676 = vsel %vm524, %v675, 0.0
        %v677 = vpack.c.bf16 0.0, %v676
        %678 = vst [vmem:[#allocation2 + $0x40] sm:$0xff] %v677
        %v679 = vld [vmem:[%s433 + $0x1] sm:$0x1]
        %vm680 = vcmp.gt.f32.partialorder %v679, 0.0
        %v681 = vsel %vm680, 1, 0
        %v682 = vlaneseq
        %v683 = vshrl.u32 %v682, 7
        %v684 = vsub.s32 0, %v683
        %v685 = vrot.slane %v681, %v684
        %vm686 = vcmp.eq.s32.totalorder %v685, 1
        %687 = vrot.lane.b32.xlu0 %v507, 111
        %v688 = vpop.permute.xlu0 %687
        %689 = vrot.lane.b32.xlu0 %v533, 111
        %v690 = vpop.permute.xlu0 %689
        %vm691 = vcmask 908288
        %v692 = vsel %vm691, %v688, %v690
        %v694 = vsel %vm686, %v692, 0.0
        %v695 = vsel %vm524, %v694, 0.0
        %v696 = vpack.c.bf16 0.0, %v695
        %697 = vst [vmem:[#allocation2 + $0x48] sm:$0xff] %v696
        %698 = vrot.lane.b32.xlu0 %v537, 109
        %v699 = vpop.permute.xlu0 %698
        %700 = vrot.lane.b32.xlu0 %v538, 109
        %v701 = vpop.permute.xlu0 %700
        %vm702 = vcmask 891904
        %v703 = vsel %vm702, %v699, %v701
        %705 = vst [vmem:[#allocation2 + $0x50] sm:$0xff] %v703
        %v706 = vld [vmem:[%s433 + $0x4] sm:$0x1]
        %vm707 = vcmp.gt.f32.partialorder %v706, 0.0
        %v708 = vsel %vm707, 1, 0
        %v709 = vlaneseq
        %v710 = vshrl.u32 %v709, 7
        %v711 = vsub.s32 0, %v710
        %v712 = vrot.slane %v708, %v711
        %vm713 = vcmp.eq.s32.totalorder %v712, 1
        %714 = vrot.lane.b32.xlu0 %v507, 107
        %v715 = vpop.permute.xlu0 %714
        %716 = vrot.lane.b32.xlu0 %v533, 107
        %v717 = vpop.permute.xlu0 %716
        %vm718 = vcmask 875520
        %v719 = vsel %vm718, %v715, %v717
        %v721 = vsel %vm713, %v719, 0.0
        %v722 = vsel %vm524, %v721, 0.0
        %v723 = vpack.c.bf16 0.0, %v722
        %724 = vst [vmem:[#allocation2 + $0x58] sm:$0xff] %v723
        %v725 = vld [vmem:[%s433 + $0x1] sm:$0x1]
        %vm726 = vcmp.gt.f32.partialorder %v725, 0.0
        %v727 = vsel %vm726, 1, 0
        %v728 = vlaneseq
        %v729 = vshrl.u32 %v728, 7
        %v730 = vsub.s32 0, %v729
        %v731 = vrot.slane %v727, %v730
        %vm732 = vcmp.eq.s32.totalorder %v731, 1
        %733 = vrot.lane.b32.xlu0 %v507, 79
        %v734 = vpop.permute.xlu0 %733
        %735 = vrot.lane.b32.xlu0 %v533, 79
        %v736 = vpop.permute.xlu0 %735
        %vm737 = vcmask 646144
        %v738 = vsel %vm737, %v734, %v736
        %v740 = vsel %vm732, %v738, 0.0
        %v741 = vsel %vm524, %v740, 0.0
        %v742 = vpack.c.bf16 0.0, %v741
        %743 = vst [vmem:[#allocation2 + $0x60] sm:$0xff] %v742
        %v744 = vld [vmem:[%s433 + $0x4] sm:$0x1]
        %vm745 = vcmp.gt.f32.partialorder %v744, 0.0
        %v746 = vsel %vm745, 1, 0
        %v747 = vlaneseq
        %v748 = vshrl.u32 %v747, 7
        %v749 = vsub.s32 0, %v748
        %v750 = vrot.slane %v746, %v749
        %vm751 = vcmp.eq.s32.totalorder %v750, 1
        %752 = vrot.lane.b32.xlu0 %v507, 75
        %v753 = vpop.permute.xlu0 %752
        %754 = vrot.lane.b32.xlu0 %v533, 75
        %v755 = vpop.permute.xlu0 %754
        %vm756 = vcmask 613376
        %v757 = vsel %vm756, %v753, %v755
        %v759 = vsel %vm751, %v757, 0.0
        %v760 = vsel %vm524, %v759, 0.0
        %v761 = vpack.c.bf16 0.0, %v760
        %762 = vst [vmem:[#allocation2 + $0x68] sm:$0xff] %v761
        %v763 = vld [vmem:[%s433 + $0x1] sm:$0x1]
        %vm764 = vcmp.gt.f32.partialorder %v763, 0.0
        %v765 = vsel %vm764, 1, 0
        %v766 = vlaneseq
        %v767 = vshrl.u32 %v766, 7
        %v768 = vsub.s32 0, %v767
        %v769 = vrot.slane %v765, %v768
        %vm770 = vcmp.eq.s32.totalorder %v769, 1
        %771 = vrot.lane.b32.xlu0 %v507, 47
        %v772 = vpop.permute.xlu0 %771
        %773 = vrot.lane.b32.xlu0 %v533, 47
        %v774 = vpop.permute.xlu0 %773
        %vm775 = vcmask 384000
        %v776 = vsel %vm775, %v772, %v774
        %v778 = vsel %vm770, %v776, 0.0
        %v779 = vsel %vm524, %v778, 0.0
        %v780 = vpack.c.bf16 0.0, %v779
        %781 = vst [vmem:[#allocation2 + $0x70] sm:$0xff] %v780
        %782 = vrot.lane.b32.xlu0 %v537, 45
        %v783 = vpop.permute.xlu0 %782
        %784 = vrot.lane.b32.xlu0 %v538, 45
        %v785 = vpop.permute.xlu0 %784
        %vm786 = vcmask 367616
        %v787 = vsel %vm786, %v783, %v785
        %789 = vst [vmem:[#allocation2 + $0x78] sm:$0xff] %v787
        %v790 = vld [vmem:[%s433 + $0x4] sm:$0x1]
        %vm791 = vcmp.gt.f32.partialorder %v790, 0.0
        %v792 = vsel %vm791, 1, 0
        %v793 = vlaneseq
        %v794 = vshrl.u32 %v793, 7
        %v795 = vsub.s32 0, %v794
        %v796 = vrot.slane %v792, %v795
        %vm797 = vcmp.eq.s32.totalorder %v796, 1
        %798 = vrot.lane.b32.xlu0 %v507, 43
        %v799 = vpop.permute.xlu0 %798
        %800 = vrot.lane.b32.xlu0 %v533, 43
        %v801 = vpop.permute.xlu0 %800
        %vm802 = vcmask 351232
        %v803 = vsel %vm802, %v799, %v801
        %v805 = vsel %vm797, %v803, 0.0
        %v806 = vsel %vm524, %v805, 0.0
        %v807 = vpack.c.bf16 0.0, %v806
        %808 = vst [vmem:[#allocation2 + $0x80] sm:$0xff] %v807
        %v809 = vld [vmem:[%s433] sm:$0x1]
        %vm810 = vcmp.gt.f32.partialorder %v809, 0.0
        %v811 = vsel %vm810, 1, 0
        %v812 = vlaneseq
        %v813 = vshrl.u32 %v812, 7
        %v814 = vsub.s32 0, %v813
        %v815 = vrot.slane %v811, %v814
        %vm816 = vcmp.eq.s32.totalorder %v815, 1
        %v817 = vsel %vm816, %v507, 0.0
        %v818 = vsel %vm524, %v817, 0.0
        %v819 = vpack.c.bf16 0.0, %v818
        %820 = vst [vmem:[#allocation2 + $0x88] sm:$0xff] %v819
        %821 = vrot.lane.b32.xlu0 %v537, 125
        %v822 = vpop.permute.xlu0 %821
        %823 = vrot.lane.b32.xlu0 %v538, 125
        %v824 = vpop.permute.xlu0 %823
        %vm825 = vcmask 1022976
        %v826 = vsel %vm825, %v822, %v824
        %828 = vst [vmem:[#allocation2 + $0x90] sm:$0xff] %v826
        %v829 = vld [vmem:[%s433 + $0x5] sm:$0x1]
        %vm830 = vcmp.gt.f32.partialorder %v829, 0.0
        %v831 = vsel %vm830, 1, 0
        %v832 = vlaneseq
        %v833 = vshrl.u32 %v832, 7
        %v834 = vsub.s32 0, %v833
        %v835 = vrot.slane %v831, %v834
        %vm836 = vcmp.eq.s32.totalorder %v835, 1
        %837 = vrot.lane.b32.xlu0 %v507, 122
        %v838 = vpop.permute.xlu0 %837
        %839 = vrot.lane.b32.xlu0 %v533, 122
        %v840 = vpop.permute.xlu0 %839
        %vm841 = vcmask 998400
        %v842 = vsel %vm841, %v838, %v840
        %v844 = vsel %vm836, %v842, 0.0
        %v845 = vsel %vm524, %v844, 0.0
        %v846 = vpack.c.bf16 0.0, %v845
        %847 = vst [vmem:[#allocation2 + $0x98] sm:$0xff] %v846
        %v848 = vld [vmem:[%s433] sm:$0x1]
        %vm849 = vcmp.gt.f32.partialorder %v848, 0.0
        %v850 = vsel %vm849, 1, 0
        %v851 = vlaneseq
        %v852 = vshrl.u32 %v851, 7
        %v853 = vsub.s32 0, %v852
        %v854 = vrot.slane %v850, %v853
        %vm855 = vcmp.eq.s32.totalorder %v854, 1
        %856 = vrot.lane.b32.xlu0 %v507, 80
        %v857 = vpop.permute.xlu0 %856
        %858 = vrot.lane.b32.xlu0 %v533, 80
        %v859 = vpop.permute.xlu0 %858
        %vm860 = vcmask 654336
        %v861 = vsel %vm860, %v857, %v859
        %v863 = vsel %vm855, %v861, 0.0
        %v864 = vsel %vm524, %v863, 0.0
        %v865 = vpack.c.bf16 0.0, %v864
        %866 = vst [vmem:[#allocation2 + $0xa0] sm:$0xff] %v865
        %v867 = vld [vmem:[%s433 + $0x5] sm:$0x1]
        %vm868 = vcmp.gt.f32.partialorder %v867, 0.0
        %v869 = vsel %vm868, 1, 0
        %v870 = vlaneseq
        %v871 = vshrl.u32 %v870, 7
        %v872 = vsub.s32 0, %v871
        %v873 = vrot.slane %v869, %v872
        %vm874 = vcmp.eq.s32.totalorder %v873, 1
        %875 = vrot.lane.b32.xlu0 %v507, 74
        %v876 = vpop.permute.xlu0 %875
        %877 = vrot.lane.b32.xlu0 %v533, 74
        %v878 = vpop.permute.xlu0 %877
        %vm879 = vcmask 605184
        %v880 = vsel %vm879, %v876, %v878
        %v882 = vsel %vm874, %v880, 0.0
        %v883 = vsel %vm524, %v882, 0.0
        %v884 = vpack.c.bf16 0.0, %v883
        %885 = vst [vmem:[#allocation2 + $0xa8] sm:$0xff] %v884
        %v886 = vld [vmem:[%s433] sm:$0x1]
        %vm887 = vcmp.gt.f32.partialorder %v886, 0.0
        %v888 = vsel %vm887, 1, 0
        %v889 = vlaneseq
        %v890 = vshrl.u32 %v889, 7
        %v891 = vsub.s32 0, %v890
        %v892 = vrot.slane %v888, %v891
        %vm893 = vcmp.eq.s32.totalorder %v892, 1
        %894 = vrot.lane.b32.xlu0 %v507, 32
        %v895 = vpop.permute.xlu0 %894
        %896 = vrot.lane.b32.xlu0 %v533, 32
        %v897 = vpop.permute.xlu0 %896
        %vm898 = vcmask 261120
        %v899 = vsel %vm898, %v895, %v897
        %v901 = vsel %vm893, %v899, 0.0
        %v902 = vsel %vm524, %v901, 0.0
        %v903 = vpack.c.bf16 0.0, %v902
        %904 = vst [vmem:[#allocation2 + $0xb0] sm:$0xff] %v903
        %905 = vrot.lane.b32.xlu0 %v537, 29
        %v906 = vpop.permute.xlu0 %905
        %907 = vrot.lane.b32.xlu0 %v538, 29
        %v908 = vpop.permute.xlu0 %907
        %vm909 = vcmask 236544
        %v910 = vsel %vm909, %v906, %v908
        %912 = vst [vmem:[#allocation2 + $0xb8] sm:$0xff] %v910
        %v913 = vld [vmem:[%s433 + $0x5] sm:$0x1]
        %vm914 = vcmp.gt.f32.partialorder %v913, 0.0
        %v915 = vsel %vm914, 1, 0
        %v916 = vlaneseq
        %v917 = vshrl.u32 %v916, 7
        %v918 = vsub.s32 0, %v917
        %v919 = vrot.slane %v915, %v918
        %vm920 = vcmp.eq.s32.totalorder %v919, 1
        %921 = vrot.lane.b32.xlu0 %v507, 26
        %v922 = vpop.permute.xlu0 %921
        %923 = vrot.lane.b32.xlu0 %v533, 26
        %v924 = vpop.permute.xlu0 %923
        %vm925 = vcmask 211968
        %v926 = vsel %vm925, %v922, %v924
        %v928 = vsel %vm920, %v926, 0.0
        %v929 = vsel %vm524, %v928, 0.0
        %v930 = vpack.c.bf16 0.0, %v929
        %931 = vst [vmem:[#allocation2 + $0xc0] sm:$0xff] %v930
        %v932 = vld [vmem:[#allocation8] sm:$0xff]
        %v933 = vld [vmem:[#allocation8 + $0x8] sm:$0xff]
        %v934 = vld [vmem:[#allocation8 + $0x10] sm:$0xff]
        %v935 = vld [vmem:[#allocation8 + $0x18] sm:$0xff]
        %v936 = vld [vmem:[#allocation8 + $0x20] sm:$0xff]
        %v937 = vld [vmem:[#allocation8 + $0x28] sm:$0xff]
        %v938 = vld [vmem:[#allocation8 + $0x30] sm:$0xff]
        %v939 = vld [vmem:[#allocation8 + $0x38] sm:$0xff]
        %v940 = vld [vmem:[#allocation8 + $0x40] sm:$0xff]
        %v941 = vld [vmem:[#allocation8 + $0x48] sm:$0xff]
        %v942 = vld [vmem:[#allocation8 + $0x50] sm:$0xff]
        %v943 = vld [vmem:[#allocation8 + $0x58] sm:$0xff]
        %v944 = vld [vmem:[#allocation8 + $0x60] sm:$0xff]
        %v945 = vld [vmem:[#allocation8 + $0x68] sm:$0xff]
        %v946 = vld [vmem:[#allocation8 + $0x70] sm:$0xff]
        %v947 = vld [vmem:[#allocation8 + $0x78] sm:$0xff]
        %v948 = vld [vmem:[#allocation8 + $0x80] sm:$0xff]
        %v949 = vld [vmem:[#allocation8 + $0x88] sm:$0xff]
        %v950 = vld [vmem:[#allocation8 + $0x90] sm:$0xff]
        %v951 = vld [vmem:[#allocation8 + $0x98] sm:$0xff]
        %v952 = vld [vmem:[#allocation8 + $0xa0] sm:$0xff]
        %v953 = vld [vmem:[#allocation8 + $0xa8] sm:$0xff]
        %v954 = vld [vmem:[#allocation8 + $0xb0] sm:$0xff]
        %v955 = vld [vmem:[#allocation8 + $0xb8] sm:$0xff]
        %v956 = vld [vmem:[#allocation8 + $0xc0] sm:$0xff]
        %v957 = vld [vmem:[#allocation8 + $0xc8] sm:$0xff]
        %v958 = vld [vmem:[#allocation8 + $0xd0] sm:$0xff]
        %v959 = vld [vmem:[#allocation8 + $0xd8] sm:$0xff]
        %v960 = vld [vmem:[#allocation8 + $0xe0] sm:$0xff]
        %v961 = vld [vmem:[#allocation8 + $0xe8] sm:$0xff]
        %v962 = vld [vmem:[#allocation8 + $0xf0] sm:$0xff]
        %v963 = vld [vmem:[#allocation8 + $0xf8] sm:$0xff]
        %v964 = vld [vmem:[#allocation2] sm:$0xff]
        %v965 = vld [vmem:[#allocation2 + $0x8] sm:$0xff]
        %v966 = vld [vmem:[#allocation2 + $0x10] sm:$0xff]
        %v967 = vld [vmem:[#allocation2 + $0x18] sm:$0xff]
        %v968 = vld [vmem:[#allocation2 + $0x20] sm:$0xff]
        %v969 = vld [vmem:[#allocation2 + $0x28] sm:$0xff]
        %v970 = vld [vmem:[#allocation2 + $0x30] sm:$0xff]
        %v971 = vld [vmem:[#allocation2 + $0x38] sm:$0xff]
        %v972 = vld [vmem:[#allocation2 + $0x40] sm:$0xff]
        %v973 = vld [vmem:[#allocation2 + $0x48] sm:$0xff]
        %v974 = vld [vmem:[#allocation2 + $0x50] sm:$0xff]
        %v975 = vld [vmem:[#allocation2 + $0x58] sm:$0xff]
        %v976 = vld [vmem:[#allocation2 + $0x60] sm:$0xff]
        %v977 = vld [vmem:[#allocation2 + $0x68] sm:$0xff]
        %v978 = vld [vmem:[#allocation2 + $0x70] sm:$0xff]
        %v979 = vld [vmem:[#allocation2 + $0x78] sm:$0xff]
        %v980 = vld [vmem:[#allocation2 + $0x80] sm:$0xff]
        %v981 = vld [vmem:[#allocation2 + $0x88] sm:$0xff]
        %v982 = vld [vmem:[#allocation2 + $0x90] sm:$0xff]
        %v983 = vld [vmem:[#allocation2 + $0x98] sm:$0xff]
        %v984 = vld [vmem:[#allocation2 + $0xa0] sm:$0xff]
        %v985 = vld [vmem:[#allocation2 + $0xa8] sm:$0xff]
        %v986 = vld [vmem:[#allocation2 + $0xb0] sm:$0xff]
        %v987 = vld [vmem:[#allocation2 + $0xb8] sm:$0xff]
        %v988 = vld [vmem:[#allocation2 + $0xc0] sm:$0xff]
        %v989 = vld [vmem:[#allocation9] sm:$0xff]
        %v990 = vld [vmem:[#allocation9 + $0x8] sm:$0xff]
        %v991 = vld [vmem:[#allocation9 + $0x10] sm:$0xff]
        %v992 = vld [vmem:[#allocation9 + $0x18] sm:$0xff]
        %v993 = vld [vmem:[#allocation9 + $0x20] sm:$0xff]
        %v994 = vld [vmem:[#allocation9 + $0x28] sm:$0xff]
        %v995 = vld [vmem:[#allocation9 + $0x30] sm:$0xff]
        %v996 = vld [vmem:[#allocation9 + $0x38] sm:$0xff]
        %v997 = vld [vmem:[#allocation9 + $0x40] sm:$0xff]
        %v998 = vld [vmem:[#allocation9 + $0x48] sm:$0xff]
        %v999 = vld [vmem:[#allocation9 + $0x50] sm:$0xff]
        %v1000 = vld [vmem:[#allocation9 + $0x58] sm:$0xff]
        %v1001 = vld [vmem:[#allocation9 + $0x60] sm:$0xff]
        %v1002 = vld [vmem:[#allocation9 + $0x68] sm:$0xff]
        %v1003 = vld [vmem:[#allocation9 + $0x70] sm:$0xff]
        %v1004 = vld [vmem:[#allocation9 + $0x78] sm:$0xff]
        %1006 = vset.pattern.permute.xlu0 0
        %1007 = vperm.xlu0 %1006, %v989
        %v1008 = vpop.permute.xlu0 %1007
        %1011 = vset.pattern.permute.xlu0 0
        %1012 = vperm.xlu0 %1011, %v990
        %v1013 = vpop.permute.xlu0 %1012
        %1016 = vset.pattern.permute.xlu0 0
        %1017 = vperm.xlu0 %1016, %v991
        %v1018 = vpop.permute.xlu0 %1017
        %1021 = vset.pattern.permute.xlu0 0
        %1022 = vperm.xlu0 %1021, %v992
        %v1023 = vpop.permute.xlu0 %1022
        %1026 = vset.pattern.permute.xlu0 0
        %1027 = vperm.xlu0 %1026, %v993
        %v1028 = vpop.permute.xlu0 %1027
        %1031 = vset.pattern.permute.xlu0 0
        %1032 = vperm.xlu0 %1031, %v994
        %v1033 = vpop.permute.xlu0 %1032
        %1036 = vset.pattern.permute.xlu0 0
        %1037 = vperm.xlu0 %1036, %v995
        %v1038 = vpop.permute.xlu0 %1037
        %1041 = vset.pattern.permute.xlu0 0
        %1042 = vperm.xlu0 %1041, %v996
        %v1043 = vpop.permute.xlu0 %1042
        %1046 = vset.pattern.permute.xlu0 0
        %1047 = vperm.xlu0 %1046, %v997
        %v1048 = vpop.permute.xlu0 %1047
        %1051 = vset.pattern.permute.xlu0 0
        %1052 = vperm.xlu0 %1051, %v998
        %v1053 = vpop.permute.xlu0 %1052
        %1056 = vset.pattern.permute.xlu0 0
        %1057 = vperm.xlu0 %1056, %v999
        %v1058 = vpop.permute.xlu0 %1057
        %1061 = vset.pattern.permute.xlu0 0
        %1062 = vperm.xlu0 %1061, %v1000
        %v1063 = vpop.permute.xlu0 %1062
        %1066 = vset.pattern.permute.xlu0 0
        %1067 = vperm.xlu0 %1066, %v1001
        %v1068 = vpop.permute.xlu0 %1067
        %1071 = vset.pattern.permute.xlu0 0
        %1072 = vperm.xlu0 %1071, %v1002
        %v1073 = vpop.permute.xlu0 %1072
        %1076 = vset.pattern.permute.xlu0 0
        %1077 = vperm.xlu0 %1076, %v1003
        %v1078 = vpop.permute.xlu0 %1077
        %1081 = vset.pattern.permute.xlu0 0
        %1082 = vperm.xlu0 %1081, %v1004
        %v1083 = vpop.permute.xlu0 %1082
        %v1117 = vunpack.c.l.b16 %v932
        %v1118 = vunpack.c.h.b16 %v932
        %v1119 = vunpack.c.l.b16 %v933
        %v1120 = vunpack.c.h.b16 %v933
        %v1121 = vunpack.c.l.b16 %v934
        %v1122 = vunpack.c.h.b16 %v934
        %v1123 = vunpack.c.l.b16 %v935
        %v1124 = vunpack.c.h.b16 %v935
        %v1125 = vunpack.c.l.b16 %v936
        %v1126 = vunpack.c.h.b16 %v936
        %v1127 = vunpack.c.l.b16 %v937
        %v1128 = vunpack.c.h.b16 %v937
        %v1129 = vunpack.c.l.b16 %v938
        %v1130 = vunpack.c.h.b16 %v938
        %v1131 = vunpack.c.l.b16 %v939
        %v1132 = vunpack.c.h.b16 %v939
        %v1133 = vunpack.c.l.b16 %v940
        %v1134 = vunpack.c.h.b16 %v940
        %v1135 = vunpack.c.l.b16 %v941
        %v1136 = vunpack.c.h.b16 %v941
        %v1137 = vunpack.c.l.b16 %v942
        %v1138 = vunpack.c.h.b16 %v942
        %v1139 = vunpack.c.l.b16 %v943
        %v1140 = vunpack.c.h.b16 %v943
        %v1141 = vunpack.c.l.b16 %v944
        %v1142 = vunpack.c.h.b16 %v944
        %v1143 = vunpack.c.l.b16 %v945
        %v1144 = vunpack.c.h.b16 %v945
        %v1145 = vunpack.c.l.b16 %v946
        %v1146 = vunpack.c.h.b16 %v946
        %v1147 = vunpack.c.l.b16 %v947
        %v1148 = vunpack.c.h.b16 %v947
        %v1149 = vunpack.c.l.b16 %v948
        %v1150 = vunpack.c.h.b16 %v948
        %v1151 = vunpack.c.l.b16 %v949
        %v1152 = vunpack.c.h.b16 %v949
        %v1153 = vunpack.c.l.b16 %v950
        %v1154 = vunpack.c.h.b16 %v950
        %v1155 = vunpack.c.l.b16 %v951
        %v1156 = vunpack.c.h.b16 %v951
        %v1157 = vunpack.c.l.b16 %v952
        %v1158 = vunpack.c.h.b16 %v952
        %v1159 = vunpack.c.l.b16 %v953
        %v1160 = vunpack.c.h.b16 %v953
        %v1161 = vunpack.c.l.b16 %v954
        %v1162 = vunpack.c.h.b16 %v954
        %v1163 = vunpack.c.l.b16 %v955
        %v1164 = vunpack.c.h.b16 %v955
        %v1165 = vunpack.c.l.b16 %v956
        %v1166 = vunpack.c.h.b16 %v956
        %v1167 = vunpack.c.l.b16 %v957
        %v1168 = vunpack.c.h.b16 %v957
        %v1169 = vunpack.c.l.b16 %v958
        %v1170 = vunpack.c.h.b16 %v958
        %v1171 = vunpack.c.l.b16 %v959
        %v1172 = vunpack.c.h.b16 %v959
        %v1173 = vunpack.c.l.b16 %v960
        %v1174 = vunpack.c.h.b16 %v960
        %v1175 = vunpack.c.l.b16 %v961
        %v1176 = vunpack.c.h.b16 %v961
        %v1177 = vunpack.c.l.b16 %v962
        %v1178 = vunpack.c.h.b16 %v962
        %v1179 = vunpack.c.l.b16 %v963
        %v1180 = vunpack.c.h.b16 %v963
        %v1181 = vpack.c.b16 %v1121, %v1117
        %v1182 = vpack.c.b16 %v1122, %v1118
        %v1183 = vpack.c.b16 %v1123, %v1119
        %v1184 = vpack.c.b16 %v1124, %v1120
        %v1185 = vpack.c.b16 %v1129, %v1125
        %v1186 = vpack.c.b16 %v1130, %v1126
        %v1187 = vpack.c.b16 %v1131, %v1127
        %v1188 = vpack.c.b16 %v1132, %v1128
        %v1189 = vpack.c.b16 %v1137, %v1133
        %v1190 = vpack.c.b16 %v1138, %v1134
        %v1191 = vpack.c.b16 %v1139, %v1135
        %v1192 = vpack.c.b16 %v1140, %v1136
        %v1193 = vpack.c.b16 %v1145, %v1141
        %v1194 = vpack.c.b16 %v1146, %v1142
        %v1195 = vpack.c.b16 %v1147, %v1143
        %v1196 = vpack.c.b16 %v1148, %v1144
        %v1197 = vpack.c.b16 %v1153, %v1149
        %v1198 = vpack.c.b16 %v1154, %v1150
        %v1199 = vpack.c.b16 %v1155, %v1151
        %v1200 = vpack.c.b16 %v1156, %v1152
        %v1201 = vpack.c.b16 %v1161, %v1157
        %v1202 = vpack.c.b16 %v1162, %v1158
        %v1203 = vpack.c.b16 %v1163, %v1159
        %v1204 = vpack.c.b16 %v1164, %v1160
        %v1205 = vpack.c.b16 %v1169, %v1165
        %v1206 = vpack.c.b16 %v1170, %v1166
        %v1207 = vpack.c.b16 %v1171, %v1167
        %v1208 = vpack.c.b16 %v1172, %v1168
        %v1209 = vpack.c.b16 %v1177, %v1173
        %v1210 = vpack.c.b16 %v1178, %v1174
        %v1211 = vpack.c.b16 %v1179, %v1175
        %v1212 = vpack.c.b16 %v1180, %v1176
        %vm1237 = vcmask 130048
        %v1239 = vsel %vm1237, %v1184, 0
        %v1242 = vsel %vm1237, %v1188, 0
        %v1245 = vsel %vm1237, %v1192, 0
        %v1248 = vsel %vm1237, %v1196, 0
        %v1251 = vsel %vm1237, %v1200, 0
        %v1254 = vsel %vm1237, %v1204, 0
        %v1257 = vsel %vm1237, %v1208, 0
        %v1260 = vsel %vm1237, %v1212, 0
        %1262 = vmatprep.subr.bf16.mxu0 0
        %1263 = vmatpush1.bf16.msra.mxu0 %v964
        %1264 = vmatprep.subr.bf16.mxu0 0
        %1265 = vmatpush1.bf16.msra.mxu0 %v965
        %1266 = vmatprep.subr.bf16.mxu0 0
        %1267 = vmatpush1.bf16.msra.mxu0 %v966
        %1268 = vmatprep.subr.bf16.mxu0 0
        %1269 = vmatpush1.bf16.msra.mxu0 %v967
        %1270 = vmatprep.subr.bf16.mxu0 0
        %1271 = vmatpush1.bf16.msra.mxu0 %v968
        %1272 = vmatprep.subr.bf16.mxu0 0
        %1273 = vmatpush1.bf16.msra.mxu0 %v969
        %1274 = vmatprep.subr.bf16.mxu0 0
        %1275 = vmatpush1.bf16.msra.mxu0 %v970
        %1276 = vmatprep.subr.bf16.mxu0 0
        %1277 = vmatpush1.bf16.msra.mxu0 %v971
        %1278 = vmatprep.subr.bf16.mxu0 0
        %1279 = vmatpush1.bf16.msra.mxu0 %v972
        %1280 = vmatprep.subr.bf16.mxu0 0
        %1281 = vmatpush1.bf16.msra.mxu0 %v973
        %1282 = vmatprep.subr.bf16.mxu0 0
        %1283 = vmatpush1.bf16.msra.mxu0 %v974
        %1284 = vmatprep.subr.bf16.mxu0 0
        %1285 = vmatpush1.bf16.msra.mxu0 %v975
        %1286 = vmatprep.subr.bf16.mxu0 0
        %1287 = vmatpush1.bf16.msra.mxu0 %v976
        %1288 = vmatprep.subr.bf16.mxu0 0
        %1289 = vmatpush1.bf16.msra.mxu0 %v977
        %1290 = vmatprep.subr.bf16.mxu0 0
        %1291 = vmatpush1.bf16.msra.mxu0 %v978
        %1292 = vmatprep.subr.bf16.mxu0 0
        %1293 = vmatpush1.bf16.msra.mxu0 %v979
        %1294 = vmatprep.mubr.bf16.mxu0 %v1182
        %1295 = vmatmul.mubr.bf16.gmra.mrb[0].mxu0 %v1181
        %v1296 = vpop.f32.mrb[0].mxu0
        %v1297 = vadd.f32 %v1008, %v1296
        %v1298 = vpop.f32.mrb[0].mxu0
        %v1299 = vpop.f32.mrb[0].mxu0
        %v1300 = vadd.f32 %v1013, %v1299
        %v1301 = vpop.f32.mrb[0].mxu0
        %1302 = vmatprep.mubr.bf16.mxu0 %v1186
        %1303 = vmatmul.mubr.bf16.gmra.mrb[0].mxu0 %v1185
        %v1304 = vpop.f32.mrb[0].mxu0
        %v1305 = vadd.f32 %v1018, %v1304
        %v1306 = vpop.f32.mrb[0].mxu0
        %v1307 = vpop.f32.mrb[0].mxu0
        %v1308 = vadd.f32 %v1023, %v1307
        %v1309 = vpop.f32.mrb[0].mxu0
        %1310 = vmatprep.mubr.bf16.mxu0 %v1190
        %1311 = vmatmul.mubr.bf16.gmra.mrb[0].mxu0 %v1189
        %v1312 = vpop.f32.mrb[0].mxu0
        %v1313 = vadd.f32 %v1028, %v1312
        %v1314 = vpop.f32.mrb[0].mxu0
        %v1315 = vpop.f32.mrb[0].mxu0
        %v1316 = vadd.f32 %v1033, %v1315
        %v1317 = vpop.f32.mrb[0].mxu0
        %1318 = vmatprep.mubr.bf16.mxu0 %v1194
        %1319 = vmatmul.mubr.bf16.gmra.mrb[0].mxu0 %v1193
        %v1320 = vpop.f32.mrb[0].mxu0
        %v1321 = vadd.f32 %v1038, %v1320
        %v1322 = vpop.f32.mrb[0].mxu0
        %v1323 = vpop.f32.mrb[0].mxu0
        %v1324 = vadd.f32 %v1043, %v1323
        %v1325 = vpop.f32.mrb[0].mxu0
        %1326 = vmatprep.mubr.bf16.mxu0 %v1198
        %1327 = vmatmul.mubr.bf16.gmra.mrb[0].mxu0 %v1197
        %v1328 = vpop.f32.mrb[0].mxu0
        %v1329 = vadd.f32 %v1048, %v1328
        %v1330 = vpop.f32.mrb[0].mxu0
        %v1331 = vpop.f32.mrb[0].mxu0
        %v1332 = vadd.f32 %v1053, %v1331
        %v1333 = vpop.f32.mrb[0].mxu0
        %1334 = vmatprep.mubr.bf16.mxu0 %v1202
        %1335 = vmatmul.mubr.bf16.gmra.mrb[0].mxu0 %v1201
        %v1336 = vpop.f32.mrb[0].mxu0
        %v1337 = vadd.f32 %v1058, %v1336
        %v1338 = vpop.f32.mrb[0].mxu0
        %v1339 = vpop.f32.mrb[0].mxu0
        %v1340 = vadd.f32 %v1063, %v1339
        %v1341 = vpop.f32.mrb[0].mxu0
        %1342 = vmatprep.mubr.bf16.mxu0 %v1206
        %1343 = vmatmul.mubr.bf16.gmra.mrb[0].mxu0 %v1205
        %v1344 = vpop.f32.mrb[0].mxu0
        %v1345 = vadd.f32 %v1068, %v1344
        %v1346 = vpop.f32.mrb[0].mxu0
        %v1347 = vpop.f32.mrb[0].mxu0
        %v1348 = vadd.f32 %v1073, %v1347
        %v1349 = vpop.f32.mrb[0].mxu0
        %1350 = vmatprep.mubr.bf16.mxu0 %v1210
        %1351 = vmatmul.mubr.bf16.gmra.mrb[0].mxu0 %v1209
        %v1352 = vpop.f32.mrb[0].mxu0
        %v1353 = vadd.f32 %v1078, %v1352
        %v1354 = vpop.f32.mrb[0].mxu0
        %v1355 = vpop.f32.mrb[0].mxu0
        %v1356 = vadd.f32 %v1083, %v1355
        %v1357 = vpop.f32.mrb[0].mxu0
        %1358 = vdwg.mxu0
        %1359 = vmatprep.subr.bf16.mxu0 0
        %1360 = vmatpush1.bf16.msra.mxu0 %v980
        %1361 = vmatprep.subr.bf16.mxu0 0
        %1362 = vmatpush1.bf16.msra.mxu0 %v981
        %1363 = vmatprep.subr.bf16.mxu0 0
        %1364 = vmatpush1.bf16.msra.mxu0 %v982
        %1365 = vmatprep.subr.bf16.mxu0 0
        %1366 = vmatpush1.bf16.msra.mxu0 %v983
        %1367 = vmatprep.subr.bf16.mxu0 0
        %1368 = vmatpush1.bf16.msra.mxu0 %v984
        %1369 = vmatprep.subr.bf16.mxu0 0
        %1370 = vmatpush1.bf16.msra.mxu0 %v985
        %1371 = vmatprep.subr.bf16.mxu0 0
        %1372 = vmatpush1.bf16.msra.mxu0 %v986
        %1373 = vmatprep.subr.bf16.mxu0 0
        %1374 = vmatpush1.bf16.msra.mxu0 %v987
        %1375 = vmatprep.subr.bf16.mxu0 0
        %1376 = vmatpush1.bf16.msra.mxu0 %v988
        %1377 = vmatprep.subr.bf16.mxu0 0
        %1378 = vmatpush1.bf16.msra.mxu0 0
        %1379 = vmatprep.subr.bf16.mxu0 0
        %1380 = vmatpush1.bf16.msra.mxu0 0
        %1381 = vmatprep.subr.bf16.mxu0 0
        %1382 = vmatpush1.bf16.msra.mxu0 0
        %1383 = vmatprep.subr.bf16.mxu0 0
        %1384 = vmatpush1.bf16.msra.mxu0 0
        %1385 = vmatprep.subr.bf16.mxu0 0
        %1386 = vmatpush1.bf16.msra.mxu0 0
        %1387 = vmatprep.subr.bf16.mxu0 0
        %1388 = vmatpush1.bf16.msra.mxu0 0
        %1389 = vmatprep.subr.bf16.mxu0 0
        %1390 = vmatpush1.bf16.msra.mxu0 0
        %1391 = vmatprep.mubr.bf16.mxu0 %v1239
        %1392 = vmatmul.mubr.bf16.gmra.mrb[0].mxu0 %v1183
        %v1393 = vpop.f32.mrb[0].mxu0
        %v1394 = vadd.f32 %v1297, %v1393
        %v1395 = vpop.f32.mrb[0].mxu0
        %v1396 = vpop.f32.mrb[0].mxu0
        %v1397 = vadd.f32 %v1300, %v1396
        %v1398 = vpop.f32.mrb[0].mxu0
        %1399 = vmatprep.mubr.bf16.mxu0 %v1242
        %1400 = vmatmul.mubr.bf16.gmra.mrb[0].mxu0 %v1187
        %v1401 = vpop.f32.mrb[0].mxu0
        %v1402 = vadd.f32 %v1305, %v1401
        %v1403 = vpop.f32.mrb[0].mxu0
        %v1404 = vpop.f32.mrb[0].mxu0
        %v1405 = vadd.f32 %v1308, %v1404
        %v1406 = vpop.f32.mrb[0].mxu0
        %1407 = vmatprep.mubr.bf16.mxu0 %v1245
        %1408 = vmatmul.mubr.bf16.gmra.mrb[0].mxu0 %v1191
        %v1409 = vpop.f32.mrb[0].mxu0
        %v1410 = vadd.f32 %v1313, %v1409
        %v1411 = vpop.f32.mrb[0].mxu0
        %v1412 = vpop.f32.mrb[0].mxu0
        %v1413 = vadd.f32 %v1316, %v1412
        %v1414 = vpop.f32.mrb[0].mxu0
        %1415 = vmatprep.mubr.bf16.mxu0 %v1248
        %1416 = vmatmul.mubr.bf16.gmra.mrb[0].mxu0 %v1195
        %v1417 = vpop.f32.mrb[0].mxu0
        %v1418 = vadd.f32 %v1321, %v1417
        %v1419 = vpop.f32.mrb[0].mxu0
        %v1420 = vpop.f32.mrb[0].mxu0
        %v1421 = vadd.f32 %v1324, %v1420
        %v1422 = vpop.f32.mrb[0].mxu0
        %1423 = vmatprep.mubr.bf16.mxu0 %v1251
        %1424 = vmatmul.mubr.bf16.gmra.mrb[0].mxu0 %v1199
        %v1425 = vpop.f32.mrb[0].mxu0
        %v1426 = vadd.f32 %v1329, %v1425
        %v1427 = vpop.f32.mrb[0].mxu0
        %v1428 = vpop.f32.mrb[0].mxu0
        %v1429 = vadd.f32 %v1332, %v1428
        %v1430 = vpop.f32.mrb[0].mxu0
        %1431 = vmatprep.mubr.bf16.mxu0 %v1254
        %1432 = vmatmul.mubr.bf16.gmra.mrb[0].mxu0 %v1203
        %v1433 = vpop.f32.mrb[0].mxu0
        %v1434 = vadd.f32 %v1337, %v1433
        %v1435 = vpop.f32.mrb[0].mxu0
        %v1436 = vpop.f32.mrb[0].mxu0
        %v1437 = vadd.f32 %v1340, %v1436
        %v1438 = vpop.f32.mrb[0].mxu0
        %1439 = vmatprep.mubr.bf16.mxu0 %v1257
        %1440 = vmatmul.mubr.bf16.gmra.mrb[0].mxu0 %v1207
        %v1441 = vpop.f32.mrb[0].mxu0
        %v1442 = vadd.f32 %v1345, %v1441
        %v1443 = vpop.f32.mrb[0].mxu0
        %v1444 = vpop.f32.mrb[0].mxu0
        %v1445 = vadd.f32 %v1348, %v1444
        %v1446 = vpop.f32.mrb[0].mxu0
        %1447 = vmatprep.mubr.bf16.mxu0 %v1260
        %1448 = vmatmul.mubr.bf16.gmra.mrb[0].mxu0 %v1211
        %v1449 = vpop.f32.mrb[0].mxu0
        %v1450 = vadd.f32 %v1353, %v1449
        %v1451 = vpop.f32.mrb[0].mxu0
        %v1452 = vpop.f32.mrb[0].mxu0
        %v1453 = vadd.f32 %v1356, %v1452
        %v1454 = vpop.f32.mrb[0].mxu0
        %1455 = vdwg.mxu0
        %v1456 = vmax.f32 %v1394, 0.0
        %v1457 = vmax.f32 %v1397, 0.0
        %v1458 = vmax.f32 %v1402, 0.0
        %v1459 = vmax.f32 %v1405, 0.0
        %v1460 = vmax.f32 %v1410, 0.0
        %v1461 = vmax.f32 %v1413, 0.0
        %v1462 = vmax.f32 %v1418, 0.0
        %v1463 = vmax.f32 %v1421, 0.0
        %v1464 = vmax.f32 %v1426, 0.0
        %v1465 = vmax.f32 %v1429, 0.0
        %v1466 = vmax.f32 %v1434, 0.0
        %v1467 = vmax.f32 %v1437, 0.0
        %v1468 = vmax.f32 %v1442, 0.0
        %v1469 = vmax.f32 %v1445, 0.0
        %v1470 = vmax.f32 %v1450, 0.0
        %v1471 = vmax.f32 %v1453, 0.0
        %v1472 = vld [vmem:[#allocation11] sm:$0xff]
        %v1473 = vld [vmem:[#allocation11 + $0x8] sm:$0xff]
        %v1474 = vld [vmem:[#allocation11 + $0x10] sm:$0xff]
        %v1475 = vld [vmem:[#allocation11 + $0x18] sm:$0xff]
        %v1476 = vld [vmem:[#allocation12] sm:$0xff]
        %v1477 = vld [vmem:[#allocation12 + $0x8] sm:$0xff]
        %v1478 = vld [vmem:[#allocation12 + $0x10] sm:$0xff]
        %v1479 = vld [vmem:[#allocation12 + $0x18] sm:$0xff]
        %vm1480 = vcmask 31744
        %v1482 = vsel %vm1480, %v1472, 0
        %v1485 = vsel %vm1480, %v1473, 0
        %v1488 = vsel %vm1480, %v1474, 0
        %v1491 = vsel %vm1480, %v1475, 0
        %v1494 = vsel %vm524, %v531, 0
        %1496 = vmatprep.subr.mxu0 0.0
        %1497 = vmatpush1.msra.mxu0 %v1494
        %1498 = vmatprep.subr.mxu0 0.0
        %1499 = vmatpush1.msra.mxu0 0.0
        %1500 = vmatprep.subr.mxu0 0.0
        %1501 = vmatpush1.msra.mxu0 0.0
        %1502 = vmatprep.subr.mxu0 0.0
        %1503 = vmatpush1.msra.mxu0 0.0
        %1504 = vmatprep.subr.mxu0 0.0
        %1505 = vmatpush1.msra.mxu0 0.0
        %1506 = vmatprep.subr.mxu0 0.0
        %1507 = vmatpush1.msra.mxu0 0.0
        %1508 = vmatprep.subr.mxu0 0.0
        %1509 = vmatpush1.msra.mxu0 0.0
        %1510 = vmatprep.subr.mxu0 0.0
        %1511 = vmatpush1.msra.mxu0 0.0
        %1512 = vmatprep.subr.mxu0 0.0
        %1513 = vmatpush1.msra.mxu0 0.0
        %1514 = vmatprep.subr.mxu0 0.0
        %1515 = vmatpush1.msra.mxu0 0.0
        %1516 = vmatprep.subr.mxu0 0.0
        %1517 = vmatpush1.msra.mxu0 0.0
        %1518 = vmatprep.subr.mxu0 0.0
        %1519 = vmatpush1.msra.mxu0 0.0
        %1520 = vmatprep.subr.mxu0 0.0
        %1521 = vmatpush1.msra.mxu0 0.0
        %1522 = vmatprep.subr.mxu0 0.0
        %1523 = vmatpush1.msra.mxu0 0.0
        %1524 = vmatprep.subr.mxu0 0.0
        %1525 = vmatpush1.msra.mxu0 0.0
        %1526 = vmatprep.subr.mxu0 0.0
        %1527 = vmatpush1.msra.mxu0 0.0
        %1528 = vmatprep.subr.mxu0 0.0
        %1529 = vmatpush1.msra.mxu0 0.0
        %1530 = vmatprep.subr.mxu0 0.0
        %1531 = vmatpush1.msra.mxu0 0.0
        %1532 = vmatprep.subr.mxu0 0.0
        %1533 = vmatpush1.msra.mxu0 0.0
        %1534 = vmatprep.subr.mxu0 0.0
        %1535 = vmatpush1.msra.mxu0 0.0
        %1536 = vmatprep.subr.mxu0 0.0
        %1537 = vmatpush1.msra.mxu0 0.0
        %1538 = vmatprep.subr.mxu0 0.0
        %1539 = vmatpush1.msra.mxu0 0.0
        %1540 = vmatprep.subr.mxu0 0.0
        %1541 = vmatpush1.msra.mxu0 0.0
        %1542 = vmatprep.subr.mxu0 0.0
        %1543 = vmatpush1.msra.mxu0 0.0
        %1544 = vmatprep.subr.mxu0 0.0
        %1545 = vmatpush1.msra.mxu0 0.0
        %1546 = vmatprep.subr.mxu0 0.0
        %1547 = vmatpush1.msra.mxu0 0.0
        %1548 = vmatprep.subr.mxu0 0.0
        %1549 = vmatpush1.msra.mxu0 0.0
        %1550 = vmatprep.subr.mxu0 0.0
        %1551 = vmatpush1.msra.mxu0 0.0
        %1552 = vmatprep.subr.mxu0 0.0
        %1553 = vmatpush1.msra.mxu0 0.0
        %1554 = vmatprep.subr.mxu0 0.0
        %1555 = vmatpush1.msra.mxu0 0.0
        %1556 = vmatprep.subr.mxu0 0.0
        %1557 = vmatpush1.msra.mxu0 0.0
        %1558 = vmatprep.subr.mxu0 0.0
        %1559 = vmatpush1.msra.mxu0 0.0
        %1560 = vmatprep.mubr.f32.mxu0 0.0
        %1561 = vmatmul.mubr.f32.gmra.mrb[0].mxu0 %v1482
        %v1562 = vpop.f32.mrb[0].mxu0
        %v1563 = vadd.f32 %v1476, %v1562
        %v1564 = vpop.f32.mrb[0].mxu0
        %1565 = vmatprep.mubr.f32.mxu0 0.0
        %1566 = vmatmul.mubr.f32.gmra.mrb[0].mxu0 %v1485
        %v1567 = vpop.f32.mrb[0].mxu0
        %v1568 = vadd.f32 %v1477, %v1567
        %v1569 = vpop.f32.mrb[0].mxu0
        %1570 = vmatprep.mubr.f32.mxu0 0.0
        %1571 = vmatmul.mubr.f32.gmra.mrb[0].mxu0 %v1488
        %v1572 = vpop.f32.mrb[0].mxu0
        %v1573 = vadd.f32 %v1478, %v1572
        %v1574 = vpop.f32.mrb[0].mxu0
        %1575 = vmatprep.mubr.f32.mxu0 0.0
        %1576 = vmatmul.mubr.f32.gmra.mrb[0].mxu0 %v1491
        %v1577 = vpop.f32.mrb[0].mxu0
        %v1578 = vadd.f32 %v1479, %v1577
        %v1579 = vpop.f32.mrb[0].mxu0
        %1580 = vdwg.mxu0
        %v1581 = vmax.f32 %v1563, 0.0
        %v1582 = vmax.f32 %v1568, 0.0
        %v1583 = vmax.f32 %v1573, 0.0
        %v1584 = vmax.f32 %v1578, 0.0
        %v1585 = vld [vmem:[#allocation14] sm:$0xf]
        %v1586 = vld [vmem:[#allocation14 + $0x4] sm:$0xf]
        %v1587 = vld [vmem:[#allocation14 + $0x8] sm:$0xf]
        %v1588 = vld [vmem:[#allocation14 + $0xc] sm:$0xf]
        %v1589 = vpack.c.bf16 %v1457, %v1456
        %v1590 = vpack.c.bf16 %v1459, %v1458
        %v1591 = vpack.c.bf16 %v1461, %v1460
        %v1592 = vpack.c.bf16 %v1463, %v1462
        %v1593 = vpack.c.bf16 %v1465, %v1464
        %v1594 = vpack.c.bf16 %v1467, %v1466
        %v1595 = vpack.c.bf16 %v1469, %v1468
        %v1596 = vpack.c.bf16 %v1471, %v1470
        %v1597 = vld [vmem:[#allocation15] sm:$0xff]
        %v1598 = vld [vmem:[#allocation15 + $0x8] sm:$0xff]
        %v1599 = vld [vmem:[#allocation15 + $0x10] sm:$0xff]
        %v1600 = vld [vmem:[#allocation15 + $0x18] sm:$0xff]
        %v1602 = vsel %vm898, %v1597, 0
        %v1605 = vsel %vm898, %v1598, 0
        %v1608 = vsel %vm898, %v1599, 0
        %v1611 = vsel %vm898, %v1600, 0
        %1613 = vmatprep.subr.mxu0 0.0
        %1614 = vmatpush1.msra.mxu0 %v1581
        %1615 = vmatprep.subr.mxu0 0.0
        %1616 = vmatpush1.msra.mxu0 %v1582
        %1617 = vmatprep.subr.mxu0 0.0
        %1618 = vmatpush1.msra.mxu0 %v1583
        %1619 = vmatprep.subr.mxu0 0.0
        %1620 = vmatpush1.msra.mxu0 %v1584
        %1621 = vmatprep.subr.mxu0 0.0
        %1622 = vmatpush1.msra.mxu0 0.0
        %1623 = vmatprep.subr.mxu0 0.0
        %1624 = vmatpush1.msra.mxu0 0.0
        %1625 = vmatprep.subr.mxu0 0.0
        %1626 = vmatpush1.msra.mxu0 0.0
        %1627 = vmatprep.subr.mxu0 0.0
        %1628 = vmatpush1.msra.mxu0 0.0
        %1629 = vmatprep.subr.mxu0 0.0
        %1630 = vmatpush1.msra.mxu0 0.0
        %1631 = vmatprep.subr.mxu0 0.0
        %1632 = vmatpush1.msra.mxu0 0.0
        %1633 = vmatprep.subr.mxu0 0.0
        %1634 = vmatpush1.msra.mxu0 0.0
        %1635 = vmatprep.subr.mxu0 0.0
        %1636 = vmatpush1.msra.mxu0 0.0
        %1637 = vmatprep.subr.mxu0 0.0
        %1638 = vmatpush1.msra.mxu0 0.0
        %1639 = vmatprep.subr.mxu0 0.0
        %1640 = vmatpush1.msra.mxu0 0.0
        %1641 = vmatprep.subr.mxu0 0.0
        %1642 = vmatpush1.msra.mxu0 0.0
        %1643 = vmatprep.subr.mxu0 0.0
        %1644 = vmatpush1.msra.mxu0 0.0
        %1645 = vmatprep.subr.mxu0 0.0
        %1646 = vmatpush1.msra.mxu0 0.0
        %1647 = vmatprep.subr.mxu0 0.0
        %1648 = vmatpush1.msra.mxu0 0.0
        %1649 = vmatprep.subr.mxu0 0.0
        %1650 = vmatpush1.msra.mxu0 0.0
        %1651 = vmatprep.subr.mxu0 0.0
        %1652 = vmatpush1.msra.mxu0 0.0
        %1653 = vmatprep.subr.mxu0 0.0
        %1654 = vmatpush1.msra.mxu0 0.0
        %1655 = vmatprep.subr.mxu0 0.0
        %1656 = vmatpush1.msra.mxu0 0.0
        %1657 = vmatprep.subr.mxu0 0.0
        %1658 = vmatpush1.msra.mxu0 0.0
        %1659 = vmatprep.subr.mxu0 0.0
        %1660 = vmatpush1.msra.mxu0 0.0
        %1661 = vmatprep.subr.mxu0 0.0
        %1662 = vmatpush1.msra.mxu0 0.0
        %1663 = vmatprep.subr.mxu0 0.0
        %1664 = vmatpush1.msra.mxu0 0.0
        %1665 = vmatprep.subr.mxu0 0.0
        %1666 = vmatpush1.msra.mxu0 0.0
        %1667 = vmatprep.subr.mxu0 0.0
        %1668 = vmatpush1.msra.mxu0 0.0
        %1669 = vmatprep.subr.mxu0 0.0
        %1670 = vmatpush1.msra.mxu0 0.0
        %1671 = vmatprep.subr.mxu0 0.0
        %1672 = vmatpush1.msra.mxu0 0.0
        %1673 = vmatprep.subr.mxu0 0.0
        %1674 = vmatpush1.msra.mxu0 0.0
        %1675 = vmatprep.subr.mxu0 0.0
        %1676 = vmatpush1.msra.mxu0 0.0
        %1677 = vmatprep.mubr.f32.mxu0 0.0
        %1678 = vmatmul.mubr.f32.gmra.mrb[0].mxu0 %v1602
        %v1679 = vpop.f32.mrb[0].mxu0
        %v1680 = vadd.f32 0.0, %v1679
        %v1681 = vpop.f32.mrb[0].mxu0
        %1682 = vmatprep.mubr.f32.mxu0 0.0
        %1683 = vmatmul.mubr.f32.gmra.mrb[0].mxu0 %v1605
        %v1684 = vpop.f32.mrb[0].mxu0
        %v1685 = vadd.f32 0.0, %v1684
        %v1686 = vpop.f32.mrb[0].mxu0
        %1687 = vmatprep.mubr.f32.mxu0 0.0
        %1688 = vmatmul.mubr.f32.gmra.mrb[0].mxu0 %v1608
        %v1689 = vpop.f32.mrb[0].mxu0
        %v1690 = vadd.f32 0.0, %v1689
        %v1691 = vpop.f32.mrb[0].mxu0
        %1692 = vmatprep.mubr.f32.mxu0 0.0
        %1693 = vmatmul.mubr.f32.gmra.mrb[0].mxu0 %v1611
        %v1694 = vpop.f32.mrb[0].mxu0
        %v1695 = vadd.f32 0.0, %v1694
        %v1696 = vpop.f32.mrb[0].mxu0
        %1697 = vdwg.mxu0
        %1699 = vset.pattern.permute.xlu0 0
        %1700 = vperm.xlu0 %1699, %v1680
        %v1701 = vpop.permute.xlu0 %1700
        %1704 = vset.pattern.permute.xlu0 0
        %1705 = vperm.xlu0 %1704, %v1685
        %v1706 = vpop.permute.xlu0 %1705
        %1709 = vset.pattern.permute.xlu0 0
        %1710 = vperm.xlu0 %1709, %v1690
        %v1711 = vpop.permute.xlu0 %1710
        %1714 = vset.pattern.permute.xlu0 0
        %1715 = vperm.xlu0 %1714, %v1695
        %v1716 = vpop.permute.xlu0 %1715
        %v1722 = vunpack.c.l.b16 %v1585
        %v1723 = vunpack.c.l.b16 %v1586
        %v1724 = vunpack.c.l.b16 %v1587
        %v1725 = vunpack.c.l.b16 %v1588
        %v1726 = vpack.c.b16 %v1723, %v1722
        %v1727 = vpack.c.b16 %v1725, %v1724
        %1730 = vmatprep.subr.bf16.mxu0 0
        %1731 = vmatpush1.bf16.msra.mxu0 %v1589
        %1732 = vmatprep.subr.bf16.mxu0 0
        %1733 = vmatpush1.bf16.msra.mxu0 %v1590
        %1734 = vmatprep.subr.bf16.mxu0 0
        %1735 = vmatpush1.bf16.msra.mxu0 %v1591
        %1736 = vmatprep.subr.bf16.mxu0 0
        %1737 = vmatpush1.bf16.msra.mxu0 %v1592
        %1738 = vmatprep.subr.bf16.mxu0 0
        %1739 = vmatpush1.bf16.msra.mxu0 %v1593
        %1740 = vmatprep.subr.bf16.mxu0 0
        %1741 = vmatpush1.bf16.msra.mxu0 %v1594
        %1742 = vmatprep.subr.bf16.mxu0 0
        %1743 = vmatpush1.bf16.msra.mxu0 %v1595
        %1744 = vmatprep.subr.bf16.mxu0 0
        %1745 = vmatpush1.bf16.msra.mxu0 %v1596
        %1746 = vmatprep.subr.bf16.mxu0 0
        %1747 = vmatpush1.bf16.msra.mxu0 0
        %1748 = vmatprep.subr.bf16.mxu0 0
        %1749 = vmatpush1.bf16.msra.mxu0 0
        %1750 = vmatprep.subr.bf16.mxu0 0
        %1751 = vmatpush1.bf16.msra.mxu0 0
        %1752 = vmatprep.subr.bf16.mxu0 0
        %1753 = vmatpush1.bf16.msra.mxu0 0
        %1754 = vmatprep.subr.bf16.mxu0 0
        %1755 = vmatpush1.bf16.msra.mxu0 0
        %1756 = vmatprep.subr.bf16.mxu0 0
        %1757 = vmatpush1.bf16.msra.mxu0 0
        %1758 = vmatprep.subr.bf16.mxu0 0
        %1759 = vmatpush1.bf16.msra.mxu0 0
        %1760 = vmatprep.subr.bf16.mxu0 0
        %1761 = vmatpush1.bf16.msra.mxu0 0
        %1762 = vmatprep.mubr.bf16.mxu0 0
        %1763 = vmatmul.mubr.bf16.gmra.mrb[0].mxu0 %v1726
        %v1764 = vpop.f32.mrb[0].mxu0
        %v1765 = vadd.f32 %v1701, %v1764
        %v1766 = vpop.f32.mrb[0].mxu0
        %v1767 = vpop.f32.mrb[0].mxu0
        %v1768 = vadd.f32 %v1706, %v1767
        %v1769 = vpop.f32.mrb[0].mxu0
        %1770 = vmatprep.mubr.bf16.mxu0 0
        %1771 = vmatmul.mubr.bf16.gmra.mrb[0].mxu0 %v1727
        %v1772 = vpop.f32.mrb[0].mxu0
        %v1773 = vadd.f32 %v1711, %v1772
        %v1774 = vpop.f32.mrb[0].mxu0
        %v1775 = vpop.f32.mrb[0].mxu0
        %v1776 = vadd.f32 %v1716, %v1775
        %v1777 = vpop.f32.mrb[0].mxu0
        %1778 = vdwg.mxu0
        %v1779 = vld [vmem:[#allocation17] sm:$0xff]
        %v1780 = vld [vmem:[#allocation17 + $0x8] sm:$0xff]
        %v1781 = vld [vmem:[#allocation17 + $0x10] sm:$0xff]
        %v1782 = vld [vmem:[#allocation17 + $0x18] sm:$0xff]
        %1784 = vset.pattern.permute.xlu0 0
        %1785 = vperm.xlu0 %1784, %v1779
        %v1786 = vpop.permute.xlu0 %1785
        %1789 = vset.pattern.permute.xlu0 0
        %1790 = vperm.xlu0 %1789, %v1780
        %v1791 = vpop.permute.xlu0 %1790
        %1794 = vset.pattern.permute.xlu0 0
        %1795 = vperm.xlu0 %1794, %v1781
        %v1796 = vpop.permute.xlu0 %1795
        %1799 = vset.pattern.permute.xlu0 0
        %1800 = vperm.xlu0 %1799, %v1782
        %v1801 = vpop.permute.xlu0 %1800
        %v1803 = vadd.f32 %v1765, %v1786
        %v1804 = vadd.f32 %v1768, %v1791
        %v1805 = vadd.f32 %v1773, %v1796
        %v1806 = vadd.f32 %v1776, %v1801
        %v1807 = vmax.f32 %v1803, 0.0
        %v1808 = vmax.f32 %v1804, 0.0
        %v1809 = vmax.f32 %v1805, 0.0
        %v1810 = vmax.f32 %v1806, 0.0
        %1811 = vst [vmem:[%s500] sm:$0xff] %v1807
        %1812 = vst [vmem:[%s500 + $0x8] sm:$0xff] %v1808
        %1813 = vst [vmem:[%s500 + $0x10] sm:$0xff] %v1809
        %1814 = vst [vmem:[%s500 + $0x18] sm:$0xff] %v1810
        %s1815 = sand.u32 %s253, 1
        %s1816 = scalar_lea.sflag [#allocation5], %s1815
        %s1817 = sand.u32 %s253, 1
        %s1818 = smul.addr %s1817, 32
        %s1819 = scalar_lea.vmem [#allocation18], %s1818
        // Predicated region
        $region93: #{fwd.1} parent=55 // pred_check
          %p1820 = pneg %p263
        $region94: #{fwd.1} parent=55 // pred_check_branch
          %1822 = sbr.rel (%p1820) target = $region96
        $region95: #{fwd.1} parent=55 // pred_region
          %s1824 = ssub.s32 512, 512
          %1825 = vsyncadd %s1816, %s1824
          %s1826 = smul.addr %s36, 8
          %s1827 = sadd.s32 %s37, %s1826
          %s1828 = smul.addr %s1827, 128
          %s1829 = scalar_lea.hbm %s9, %s1828
          %s1830 = sshll.u32 %s1819, 4
          %s1831 = int_to_ptr.vmem [resolvable:$true] %s1830
          %1836 = dma.vmem_to_hbm [thread:$0]  %s1831, 512, %s1829, %s1816, 128, 256, 8
        $region96: #{fwd.1} parent=55 // pred_fallthru
          _
      $region56: #{fwd.1} parent=5 // pred_fallthru
        _
      %p1837 = scmp.le.s32.totalorder 2, %s27
      // Predicated region
      $region97: #{fwd.1} parent=5 // pred_check
        %p1838 = pneg %p1837
      $region98: #{fwd.1} parent=5 // pred_check_branch
        %1840 = sbr.rel (%p1838) target = $region100
      $region99: #{fwd.1} parent=5 // pred_region
        %s1841 = ssub.s32 %s27, 2
        // Predicated region
        $region101: #{fwd.1} parent=99 // pred_check
          %p1842 = pneg %p269
        $region102: #{fwd.1} parent=99 // pred_check_branch
          %1844 = sbr.rel (%p1842) target = $region104
        $region103: #{fwd.1} parent=99 // pred_region
          %s1845 = sand.u32 %s254, 1
          %s1846 = scalar_lea.sflag [#allocation5], %s1845
          %s1847 = sand.u32 %s254, 1
          %s1848 = smul.addr %s1847, 32
          %s1849 = scalar_lea.vmem [#allocation18], %s1848
          %1850 = dma.done %s1846, 512
        $region104: #{fwd.1} parent=99 // pred_fallthru
          _
      $region100: #{fwd.1} parent=5 // pred_fallthru
        _
    $region6: #{fwd.1} parent=1 // loop_footer
      %s31 = sadd.s32 1, %s27
    $region7: #{fwd.1} parent=1 // loop_footer_branch
      %26 = sbr.rel target = $region3
    $region8: #{fwd.1} parent=1 // loop_exit
      _
    %1851 = vsyncpa [#allocation4], 1
    %s1852 = scalar_lea.sflag [#allocation4], 1
    %1853 = vsyncpa %s1852, 1
    %1854 = vsyncpa [#allocation7], 1
    %s1855 = scalar_lea.sflag [#allocation7], 1
    %1856 = vsyncpa %s1855, 1
    %1857 = vsyncpa [#allocation10], 1
    %1858 = vsyncpa [#allocation13], 1
    %1859 = vsyncpa [#allocation16], 1
    %1860 = vsyncpa [#allocation5], 1
    %s1861 = scalar_lea.sflag [#allocation5], 1
    %1862 = vsyncpa %s1861, 1

</llo_original>
